<compile_context>
chip_gen: v7x
topology: tpu7x:2x2x1
jax: 0.10.0
libtpu: 0.0.40
codegen_flags: <defaults>
</compile_context>

<pallas_src>
import functools
import math

import jax
import jax.numpy as jnp
from jax import lax
from jax.experimental import pallas as pl
from jax.experimental.pallas import tpu as pltpu

_MXU_DTYPE = jnp.bfloat16          # MXU operand dtype (f32 accumulation everywhere)
_ACT_DTYPE = jnp.bfloat16          # inter-kernel activation dtype
_VMEM_LIMIT = 48 * 1024 * 1024     # explicit scoped-VMEM budget (fits v7x 64 MiB)


# ----------------------------------------------------------------------------- helpers

def _gelu(x):
    # BERT-style tanh-approximate gelu (EUP tanh).
    return 0.5 * x * (1.0 + jnp.tanh(0.7978845608028654 * (x + 0.044715 * x * x * x)))


def _round_up(x, m):
    return ((x + m - 1) // m) * m


def _choose_tile(dim, target, align):
    """Pick a tile <= target (multiple of `align`) and the padded extent it divides.
    Never falls back to a huge full-extent tile; pads instead."""
    if dim <= target:
        return dim, dim
    t = (target // align) * align
    while t >= align:
        if dim % t == 0:
            return t, dim
        t -= align
    t = (target // align) * align
    return t, _round_up(dim, t)


# ----------------------------------------------------------------------------- dense: y = act(x @ w + b), 2-D grid, no K-tiling

def _dense_kernel(x_ref, w_ref, b_ref, o_ref, *, activation):
    y = jnp.dot(x_ref[...].astype(_MXU_DTYPE), w_ref[...].astype(_MXU_DTYPE),
                preferred_element_type=jnp.float32)
    y = y + b_ref[...].astype(jnp.float32)
    if activation == "gelu":
        y = _gelu(y)
    elif activation == "tanh":
        y = jnp.tanh(y)
    o_ref[...] = y.astype(o_ref.dtype)


def dense(x, w, b, activation=None, tm_target=512, tn_target=4096):
    """x:[M,K] @ w:[K,N] + b:[N].  tk = K (full); activations/weights bf16, acc f32.
    Rows / cols are padded up to the tile and sliced off afterwards."""
    M, K = x.shape
    N = w.shape[1]
    tm, Mp = _choose_tile(M, tm_target, 8)
    tn, Np = _choose_tile(N, tn_target, 128)
    if Mp != M:
        x = jnp.pad(x, ((0, Mp - M), (0, 0)))
    if Np != N:
        w = jnp.pad(w, ((0, 0), (0, Np - N)))
        b = jnp.pad(b, (0, Np - N))
    grid = (Mp // tm, Np // tn)
    esz = jnp.dtype(_MXU_DTYPE).itemsize
    cost = pl.CostEstimate(
        flops=2 * Mp * Np * K,
        transcendentals=(Mp * Np) if activation in ("gelu", "tanh") else 0,
        bytes_accessed=esz * (Mp * K + K * Np + Mp * Np) + 4 * Np)
    out = pl.pallas_call(
        functools.partial(_dense_kernel, activation=activation),
        out_shape=jax.ShapeDtypeStruct((Mp, Np), _ACT_DTYPE),
        grid=grid,
        in_specs=[
            pl.BlockSpec((tm, K), lambda i, j: (i, 0)),    # row panel, resident over j
            pl.BlockSpec((K, tn), lambda i, j: (0, j)),    # weight (resident if Np==tn)
            pl.BlockSpec((1, tn), lambda i, j: (0, j)),
        ],
        out_specs=pl.BlockSpec((tm, tn), lambda i, j: (i, j)),
        compiler_params=pltpu.CompilerParams(
            dimension_semantics=("parallel", "parallel"),
            vmem_limit_bytes=_VMEM_LIMIT),
        cost_estimate=cost,
    )(x, w, b.reshape(1, Np))
    return out[:M, :N]


# ----------------------------------------------------------------------------- dense fused with bias + [gelu] + [residual] + LayerNorm

def _dense_ln_kernel(*refs, activation, eps, has_residual):
    if has_residual:
        x_ref, w_ref, b_ref, r_ref, g_ref, bb_ref, o_ref = refs
    else:
        x_ref, w_ref, b_ref, g_ref, bb_ref, o_ref = refs
    y = jnp.dot(x_ref[...].astype(_MXU_DTYPE), w_ref[...].astype(_MXU_DTYPE),
                preferred_element_type=jnp.float32)
    y = y + b_ref[...].astype(jnp.float32)
    if activation == "gelu":
        y = _gelu(y)
    if has_residual:
        y = y + r_ref[...].astype(jnp.float32)
    mu = jnp.mean(y, axis=-1, keepdims=True)
    var = jnp.mean(jnp.square(y - mu), axis=-1, keepdims=True)
    y = (y - mu) * lax.rsqrt(var + eps)
    o_ref[...] = (y * g_ref[...].astype(jnp.float32)
                  + bb_ref[...].astype(jnp.float32)).astype(o_ref.dtype)


def dense_ln(x, w, b, gamma, beta, residual=None, activation=None, eps=1e-12,
             tm_target=512):
    """LayerNorm( [residual +] act(x @ w + b) ).  LN needs full N per row, so only
    rows are tiled; weight ([K,N], constant index) is DMA'd once per call."""
    M, K = x.shape
    N = w.shape[1]
    tm, Mp = _choose_tile(M, tm_target, 8)
    has_residual = residual is not None
    if Mp != M:
        x = jnp.pad(x, ((0, Mp - M), (0, 0)))
        if has_residual:
            residual = jnp.pad(residual, ((0, Mp - M), (0, 0)))

    in_specs = [
        pl.BlockSpec((tm, K), lambda i: (i, 0)),
        pl.BlockSpec((K, N), lambda i: (0, 0)),
        pl.BlockSpec((1, N), lambda i: (0, 0)),
    ]
    args = [x, w, b.reshape(1, N)]
    if has_residual:
        in_specs.append(pl.BlockSpec((tm, N), lambda i: (i, 0)))
        args.append(residual)
    in_specs += [pl.BlockSpec((1, N), lambda i: (0, 0)),
                 pl.BlockSpec((1, N), lambda i: (0, 0))]
    args += [gamma.reshape(1, N), beta.reshape(1, N)]

    esz = jnp.dtype(_MXU_DTYPE).itemsize
    cost = pl.CostEstimate(
        flops=2 * Mp * N * K + 8 * Mp * N,
        transcendentals=(Mp * N if activation == "gelu" else 0) + Mp,
        bytes_accessed=esz * (Mp * K + K * N + (1 + int(has_residual)) * Mp * N))

    out = pl.pallas_call(
        functools.partial(_dense_ln_kernel, activation=activation, eps=eps,
                          has_residual=has_residual),
        out_shape=jax.ShapeDtypeStruct((Mp, N), _ACT_DTYPE),
        grid=(Mp // tm,),
        in_specs=in_specs,
        out_specs=pl.BlockSpec((tm, N), lambda i: (i, 0)),
        compiler_params=pltpu.CompilerParams(
            dimension_semantics=("parallel",),
            vmem_limit_bytes=_VMEM_LIMIT),
        cost_estimate=cost,
    )(*args)
    return out[:M]


# ----------------------------------------------------------------------------- fused embedding add + LayerNorm

def _embed_ln_kernel(w_ref, t_ref, p_ref, g_ref, b_ref, o_ref, *, eps):
    x = (w_ref[0].astype(jnp.float32) + t_ref[0].astype(jnp.float32)
         + p_ref[...].astype(jnp.float32))
    mu = jnp.mean(x, axis=-1, keepdims=True)
    var = jnp.mean(jnp.square(x - mu), axis=-1, keepdims=True)
    y = (x - mu) * lax.rsqrt(var + eps)
    o_ref[0] = (y * g_ref[...].astype(jnp.float32)
                + b_ref[...].astype(jnp.float32)).astype(o_ref.dtype)


def embed_layernorm(word, ttype, pos, gamma, beta, eps=1e-12):
    """LayerNorm(word + ttype + pos) with the sum fused (no HBM round trip).
    word/ttype: [B,L,H], pos: [L,H]."""
    B, L, H = word.shape
    return pl.pallas_call(
        functools.partial(_embed_ln_kernel, eps=eps),
        out_shape=jax.ShapeDtypeStruct((B, L, H), _ACT_DTYPE),
        grid=(B,),
        in_specs=[
            pl.BlockSpec((1, L, H), lambda b: (b, 0, 0)),
            pl.BlockSpec((1, L, H), lambda b: (b, 0, 0)),
            pl.BlockSpec((L, H), lambda b: (0, 0)),
            pl.BlockSpec((1, H), lambda b: (0, 0)),
            pl.BlockSpec((1, H), lambda b: (0, 0)),
        ],
        out_specs=pl.BlockSpec((1, L, H), lambda b: (b, 0, 0)),
        compiler_params=pltpu.CompilerParams(
            dimension_semantics=("parallel",),
            vmem_limit_bytes=_VMEM_LIMIT),
    )(word, ttype, pos, gamma.reshape(1, H), beta.reshape(1, H))


# ----------------------------------------------------------------------------- attention

def _attn_group_kernel(q_ref, k_ref, v_ref, m_ref, o_ref, *, hpg, dh, scale):
    m = m_ref[0]                                    # [1, L] additive mask (0 / -1e4), f32
    for j in range(hpg):                            # small static unroll within the group
        q = q_ref[0, :, j * dh:(j + 1) * dh].astype(_MXU_DTYPE)     # [L,Dh]
        k = k_ref[0, :, j * dh:(j + 1) * dh].astype(_MXU_DTYPE)
        v = v_ref[0, :, j * dh:(j + 1) * dh].astype(_MXU_DTYPE)
        s = lax.dot_general(q, k, dimension_numbers=(((1,), (1,)), ((), ())),
                            preferred_element_type=jnp.float32) * scale           # [L,L]
        s = s + m
        s = s - jnp.max(s, axis=-1, keepdims=True)
        p = jnp.exp(s)
        p = p * pl.reciprocal(jnp.sum(p, axis=-1, keepdims=True), approx=True)
        ctx = jnp.dot(p.astype(_MXU_DTYPE), v, preferred_element_type=jnp.float32)
        o_ref[0, :, j * dh:(j + 1) * dh] = ctx.astype(o_ref.dtype)


def _attn_full_kernel(qkv_ref, m_ref, o_ref, *, heads, dh, hidden, scale):
    # Fallback (tiny / non-128-aligned hidden size): all heads of one batch element.
    m = m_ref[0]
    outs = []
    for h in range(heads):
        q = qkv_ref[0, :, h * dh:(h + 1) * dh].astype(_MXU_DTYPE)
        k = qkv_ref[0, :, hidden + h * dh:hidden + (h + 1) * dh].astype(_MXU_DTYPE)
        v = qkv_ref[0, :, 2 * hidden + h * dh:2 * hidden + (h + 1) * dh].astype(_MXU_DTYPE)
        s = lax.dot_general(q, k, dimension_numbers=(((1,), (1,)), ((), ())),
                            preferred_element_type=jnp.float32) * scale
        s = s + m
        s = s - jnp.max(s, axis=-1, keepdims=True)
        p = jnp.exp(s)
        p = p * pl.reciprocal(jnp.sum(p, axis=-1, keepdims=True), approx=True)
        outs.append(jnp.dot(p.astype(_MXU_DTYPE), v, preferred_element_type=jnp.float32))
    o_ref[0] = jnp.concatenate(outs, axis=-1).astype(o_ref.dtype)


def attention(qkv, addmask, *, heads):
    """qkv:[B,L,3H] (packed Q|K|V), addmask:[B,1,L] additive -> [B,L,H]."""
    B, L, threeH = qkv.shape
    H = threeH // 3
    Dh = H // heads
    scale = 1.0 / math.sqrt(Dh)

    # Pick a 128-lane-aligned head-group width (e.g. 2 heads of Dh=64 -> 128).
    gw = None
    if H % 128 == 0:
        if Dh <= 128 and 128 % Dh == 0:
            gw = 128
        elif Dh % 128 == 0:
            gw = Dh

    cost = pl.CostEstimate(
        flops=4 * B * heads * L * L * Dh,
        transcendentals=B * heads * L * L,
        bytes_accessed=2 * (B * L * threeH + B * L * H) + 4 * B * L)

    if gw is not None:
        G = H // gw                    # number of head groups
        hpg = gw // Dh                 # heads per group
        return pl.pallas_call(
            functools.partial(_attn_group_kernel, hpg=hpg, dh=Dh, scale=scale),
            out_shape=jax.ShapeDtypeStruct((B, L, H), _ACT_DTYPE),
            grid=(B, G),
            in_specs=[
                pl.BlockSpec((1, L, gw), lambda b, g: (b, 0, g)),           # Q panel
                pl.BlockSpec((1, L, gw), lambda b, g: (b, 0, G + g)),       # K panel
                pl.BlockSpec((1, L, gw), lambda b, g: (b, 0, 2 * G + g)),   # V panel
                pl.BlockSpec((1, 1, L), lambda b, g: (b, 0, 0)),
            ],
            out_specs=pl.BlockSpec((1, L, gw), lambda b, g: (b, 0, g)),
            compiler_params=pltpu.CompilerParams(
                dimension_semantics=("parallel", "parallel"),
                vmem_limit_bytes=_VMEM_LIMIT),
            cost_estimate=cost,
        )(qkv, qkv, qkv, addmask)

    # Fallback path (hidden not a multiple of 128 — e.g. the small smoke test).
    return pl.pallas_call(
        functools.partial(_attn_full_kernel, heads=heads, dh=Dh, hidden=H, scale=scale),
        out_shape=jax.ShapeDtypeStruct((B, L, H), _ACT_DTYPE),
        grid=(B,),
        in_specs=[
            pl.BlockSpec((1, L, threeH), lambda b: (b, 0, 0)),
            pl.BlockSpec((1, 1, L), lambda b: (b, 0, 0)),
        ],
        out_specs=pl.BlockSpec((1, L, H), lambda b: (b, 0, 0)),
        compiler_params=pltpu.CompilerParams(
            dimension_semantics=("parallel",),
            vmem_limit_bytes=_VMEM_LIMIT),
        cost_estimate=cost,
    )(qkv, addmask)


# ----------------------------------------------------------------------------- params

def init_params(key, cfg):
    H, I, V = cfg["hidden"], cfg["inter"], cfg["vocab"]
    P, T = cfg["max_pos"], cfg["type_vocab"]
    std = cfg["init_range"]

    keys = iter(jax.random.split(key, 8 + 4 * cfg["layers"]))

    def norm_bf16(shape):
        return (std * jax.random.normal(next(keys), shape, jnp.float32)).astype(jnp.bfloat16)

    word_emb = norm_bf16((V, H))
    word_emb = word_emb.at[0].set(0.0)   # padding_idx=0 zero row (nn.Embedding semantics)

    params = {
        "word_emb": word_emb,                            # bf16, tied with MLM decoder
        "pos_emb": norm_bf16((P, H)),
        "type_emb": norm_bf16((T, H)),
        "emb_ln_g": jnp.ones((H,), jnp.float32),
        "emb_ln_b": jnp.zeros((H,), jnp.float32),
        "layers": [],
        # pooler
        "pool_w": norm_bf16((H, H)), "pool_b": jnp.zeros((H,), jnp.float32),
        # MLM head (transform + decoder tied to word embeddings)
        "mlm_wt": norm_bf16((H, H)), "mlm_bt": jnp.zeros((H,), jnp.float32),
        "mlm_ln_g": jnp.ones((H,), jnp.float32), "mlm_ln_b": jnp.zeros((H,), jnp.float32),
        "mlm_dec_b": jnp.zeros((V,), jnp.float32),
        # NSP head
        "nsp_w": norm_bf16((H, 2)), "nsp_b": jnp.zeros((2,), jnp.float32),
    }

    for _ in range(cfg["layers"]):
        params["layers"].append({
            # fused Q|K|V projection (equivalent to concatenated wq|wk|wv)
            "wqkv": norm_bf16((H, 3 * H)), "bqkv": jnp.zeros((3 * H,), jnp.float32),
            "wo": norm_bf16((H, H)), "bo": jnp.zeros((H,), jnp.float32),
            "ln1_g": jnp.ones((H,), jnp.float32), "ln1_b": jnp.zeros((H,), jnp.float32),
            "w1": norm_bf16((H, I)), "b1": jnp.zeros((I,), jnp.float32),
            "w2": norm_bf16((I, H)), "b2": jnp.zeros((H,), jnp.float32),
            "ln2_g": jnp.ones((H,), jnp.float32), "ln2_b": jnp.zeros((H,), jnp.float32),
        })
    return params


# ----------------------------------------------------------------------------- forward

def bert_pretrain_forward(params, cfg, token_ids, token_type_ids=None, token_masks=None):
    B, L = token_ids.shape
    H, heads = cfg["hidden"], cfg["heads"]
    V = cfg["vocab"]

    if token_type_ids is None:
        token_type_ids = token_ids - token_ids
    if token_masks is None:
        token_masks = (token_ids > 0).astype(jnp.float32)
    else:
        token_masks = token_masks.astype(jnp.float32)

    # ---- embeddings: gathers in XLA, add + LayerNorm fused in one Pallas kernel ----
    word = jnp.take(params["word_emb"], token_ids, axis=0)         # [B,L,H] bf16
    ttype = jnp.take(params["type_emb"], token_type_ids, axis=0)   # [B,L,H] bf16
    pos = params["pos_emb"][:L]                                    # [L,H]   bf16
    x = embed_layernorm(word, ttype, pos,
                        params["emb_ln_g"], params["emb_ln_b"]).reshape(B * L, H)

    # additive attention mask, computed ONCE per forward (shared by all heads/layers)
    addmask = ((1.0 - token_masks) * (-10000.0)).reshape(B, 1, L)

    # ---- transformer encoder layers (post-LN BERT) ----
    for lyr in params["layers"]:
        qkv = dense(x, lyr["wqkv"], lyr["bqkv"])                   # [B*L,3H] fused Q|K|V
        ctx = attention(qkv.reshape(B, L, 3 * H), addmask, heads=heads)   # [B,L,H]
        x = dense_ln(ctx.reshape(B * L, H), lyr["wo"], lyr["bo"],
                     lyr["ln1_g"], lyr["ln1_b"], residual=x)       # proj + residual + LN
        h = dense(x, lyr["w1"], lyr["b1"], activation="gelu")      # FFN up + gelu
        x = dense_ln(h, lyr["w2"], lyr["b2"],
                     lyr["ln2_g"], lyr["ln2_b"], residual=x)       # FFN down + residual + LN

    token_embeddings = x.reshape(B, L, H)

    # ---- pooler on [CLS] + NSP head (tiny: keep in plain XLA, f32) ----
    cls_before_pooler = token_embeddings[:, 0].astype(jnp.float32)           # [B,H]
    cls_embedding = jnp.tanh(cls_before_pooler @ params["pool_w"].astype(jnp.float32)
                             + params["pool_b"])
    nsp_logits = cls_embedding @ params["nsp_w"].astype(jnp.float32) + params["nsp_b"]

    # ---- MLM head ----
    t = dense_ln(x, params["mlm_wt"], params["mlm_bt"],
                 params["mlm_ln_g"], params["mlm_ln_b"], activation="gelu")  # transform+LN
    # one-time bf16 transpose of the tied word embeddings -> plain dense path
    # (no per-tile XLU transpose inside the decoder kernel)
    w_dec_t = params["word_emb"].T                                           # [H,V] bf16
    mlm_logits = dense(t, w_dec_t, params["mlm_dec_b"],
                       tm_target=1024, tn_target=2048).reshape(B, L, V)      # bf16 logits

    return mlm_logits, nsp_logits


# ----------------------------------------------------------------------------- main

if __name__ == "__main__":
    key = jax.random.PRNGKey(0)

    # --- config 1: tiny, exercises the full-block attention fallback ---
    cfg1 = dict(hidden=32, inter=64, layers=2, heads=4,
                vocab=128, max_pos=64, type_vocab=2, init_range=0.02)
    k_p1, k_t1, k_y1, k_p2, k_t2, k_y2 = jax.random.split(key, 6)
    params1 = init_params(k_p1, cfg1)
    B, L = 2, 8
    tok1 = jax.random.randint(k_t1, (B, L), 0, cfg1["vocab"], dtype=jnp.int32)
    typ1 = jax.random.randint(k_y1, (B, L), 0, cfg1["type_vocab"], dtype=jnp.int32)
    fwd1 = jax.jit(lambda p, a, b_: bert_pretrain_forward(p, cfg1, a, b_))
    mlm1, nsp1 = fwd1(params1, tok1, typ1)
    jax.block_until_ready((mlm1, nsp1))
    assert mlm1.shape == (B, L, cfg1["vocab"]) and nsp1.shape == (B, 2)
    assert bool(jnp.all(jnp.isfinite(mlm1.astype(jnp.float32)))) and bool(jnp.all(jnp.isfinite(nsp1)))

    # --- config 2: hidden multiple of 128, exercises the head-group-blocked attention ---
    cfg2 = dict(hidden=128, inter=256, layers=1, heads=2,
                vocab=256, max_pos=64, type_vocab=2, init_range=0.02)
    params2 = init_params(k_p2, cfg2)
    tok2 = jax.random.randint(k_t2, (B, L), 0, cfg2["vocab"], dtype=jnp.int32)
    typ2 = jax.random.randint(k_y2, (B, L), 0, cfg2["type_vocab"], dtype=jnp.int32)
    fwd2 = jax.jit(lambda p, a, b_: bert_pretrain_forward(p, cfg2, a, b_))
    mlm2, nsp2 = fwd2(params2, tok2, typ2)
    jax.block_until_ready((mlm2, nsp2))
    assert mlm2.shape == (B, L, cfg2["vocab"]) and nsp2.shape == (B, 2)
    assert bool(jnp.all(jnp.isfinite(mlm2.astype(jnp.float32)))) and bool(jnp.all(jnp.isfinite(nsp2)))

    print("KERNEL_OK")
</pallas_src>

<mosaic_0001>
module attributes {stable_mosaic.version = 11 : i64} {
  func.func @_embed_ln_kernel(%arg0: i32, %arg1: memref<1x8x32xbf16, #tpu.memory_space<vmem>>, %arg2: memref<1x8x32xbf16, #tpu.memory_space<vmem>>, %arg3: memref<8x32xbf16, #tpu.memory_space<vmem>>, %arg4: memref<1x32xf32, #tpu.memory_space<vmem>>, %arg5: memref<1x32xf32, #tpu.memory_space<vmem>>, %arg6: memref<1x8x32xbf16, #tpu.memory_space<vmem>>) attributes {dimension_semantics = [#tpu.dimension_semantics<parallel>], iteration_bounds = array<i64: 2>, scalar_prefetch = 0 : i64, scratch_operands = 0 : i64, tpu.core_type = #tpu.core_type<tc>, window_params = [{transform_indices = @transform_0, window_bounds = array<i64: 1, 8, 32>}, {transform_indices = @transform_1, window_bounds = array<i64: 1, 8, 32>}, {pipeline_mode = #tpu.pipeline_mode<synchronous>, transform_indices = @transform_2, window_bounds = array<i64: 8, 32>}, {pipeline_mode = #tpu.pipeline_mode<synchronous>, transform_indices = @transform_3, window_bounds = array<i64: 1, 32>}, {pipeline_mode = #tpu.pipeline_mode<synchronous>, transform_indices = @transform_4, window_bounds = array<i64: 1, 32>}, {transform_indices = @transform_5, window_bounds = array<i64: 1, 8, 32>}]} {
    %c0 = arith.constant 0 : index
    %c0_0 = arith.constant 0 : index
    %c0_1 = arith.constant 0 : index
    %0 = vector.load %arg1[%c0, %c0_0, %c0_1] : memref<1x8x32xbf16, #tpu.memory_space<vmem>>, vector<1x8x32xbf16>
    %1 = vector.shape_cast %0 : vector<1x8x32xbf16> to vector<8x32xbf16>
    %2 = arith.extf %1 : vector<8x32xbf16> to vector<8x32xf32>
    %c0_2 = arith.constant 0 : index
    %c0_3 = arith.constant 0 : index
    %c0_4 = arith.constant 0 : index
    %3 = vector.load %arg2[%c0_2, %c0_3, %c0_4] : memref<1x8x32xbf16, #tpu.memory_space<vmem>>, vector<1x8x32xbf16>
    %4 = vector.shape_cast %3 : vector<1x8x32xbf16> to vector<8x32xbf16>
    %5 = arith.extf %4 : vector<8x32xbf16> to vector<8x32xf32>
    %6 = arith.addf %2, %5 : vector<8x32xf32>
    %c0_5 = arith.constant 0 : index
    %c0_6 = arith.constant 0 : index
    %7 = vector.load %arg3[%c0_5, %c0_6] : memref<8x32xbf16, #tpu.memory_space<vmem>>, vector<8x32xbf16>
    %8 = arith.extf %7 : vector<8x32xbf16> to vector<8x32xf32>
    %9 = arith.addf %6, %8 : vector<8x32xf32>
    %cst = arith.constant dense<0.000000e+00> : vector<8xf32>
    %10 = vector.multi_reduction <add>, %9, %cst [1] : vector<8x32xf32> to vector<8xf32>
    %11 = vector.shape_cast %10 : vector<8xf32> to vector<8x1xf32>
    %cst_7 = arith.constant 3.200000e+01 : f32
    %12 = vector.broadcast %cst_7 : f32 to vector<8x1xf32>
    %13 = arith.divf %11, %12 : vector<8x1xf32>
    %14 = vector.broadcast %13 : vector<8x1xf32> to vector<8x32xf32>
    %15 = arith.subf %9, %14 : vector<8x32xf32>
    %16 = arith.mulf %15, %15 : vector<8x32xf32>
    %cst_8 = arith.constant dense<0.000000e+00> : vector<8xf32>
    %17 = vector.multi_reduction <add>, %16, %cst_8 [1] : vector<8x32xf32> to vector<8xf32>
    %18 = vector.shape_cast %17 : vector<8xf32> to vector<8x1xf32>
    %cst_9 = arith.constant 3.200000e+01 : f32
    %19 = vector.broadcast %cst_9 : f32 to vector<8x1xf32>
    %20 = arith.divf %18, %19 : vector<8x1xf32>
    %21 = vector.broadcast %13 : vector<8x1xf32> to vector<8x32xf32>
    %22 = arith.subf %9, %21 : vector<8x32xf32>
    %cst_10 = arith.constant 9.99999996E-13 : f32
    %23 = vector.broadcast %cst_10 : f32 to vector<8x1xf32>
    %24 = arith.addf %20, %23 : vector<8x1xf32>
    %25 = math.rsqrt %24 : vector<8x1xf32>
    %26 = vector.broadcast %25 : vector<8x1xf32> to vector<8x32xf32>
    %27 = arith.mulf %22, %26 : vector<8x32xf32>
    %c0_11 = arith.constant 0 : index
    %c0_12 = arith.constant 0 : index
    %28 = vector.load %arg4[%c0_11, %c0_12] : memref<1x32xf32, #tpu.memory_space<vmem>>, vector<1x32xf32>
    %29 = vector.broadcast %28 : vector<1x32xf32> to vector<8x32xf32>
    %30 = arith.mulf %27, %29 : vector<8x32xf32>
    %c0_13 = arith.constant 0 : index
    %c0_14 = arith.constant 0 : index
    %31 = vector.load %arg5[%c0_13, %c0_14] : memref<1x32xf32, #tpu.memory_space<vmem>>, vector<1x32xf32>
    %32 = vector.broadcast %31 : vector<1x32xf32> to vector<8x32xf32>
    %33 = arith.addf %30, %32 : vector<8x32xf32>
    %34 = arith.truncf %33 : vector<8x32xf32> to vector<8x32xbf16>
    %c0_15 = arith.constant 0 : index
    %c0_16 = arith.constant 0 : index
    %c0_17 = arith.constant 0 : index
    %35 = vector.load %arg6[%c0_15, %c0_16, %c0_17] : memref<1x8x32xbf16, #tpu.memory_space<vmem>>, vector<1x8x32xbf16>
    %36 = vector.shape_cast %35 : vector<1x8x32xbf16> to vector<8x32xbf16>
    %37 = vector.shape_cast %34 : vector<8x32xbf16> to vector<1x8x32xbf16>
    tpu.vector_store %arg6[%c0_15, %c0_16, %c0_17], %37 {strides = array<i32>} : memref<1x8x32xbf16, #tpu.memory_space<vmem>>, vector<1x8x32xbf16>,
    return
  }
  func.func @transform_0(%arg0: i32) -> (i32, i32, i32) {
    %c0_i32 = arith.constant 0 : i32
    %c0_i32_0 = arith.constant 0 : i32
    %c0_i32_1 = arith.constant 0 : i32
    return %arg0, %c0_i32, %c0_i32_0 : i32, i32, i32
  }
  func.func @transform_1(%arg0: i32) -> (i32, i32, i32) {
    %c0_i32 = arith.constant 0 : i32
    %c0_i32_0 = arith.constant 0 : i32
    %c0_i32_1 = arith.constant 0 : i32
    return %arg0, %c0_i32, %c0_i32_0 : i32, i32, i32
  }
  func.func @transform_2(%arg0: i32) -> (i32, i32) {
    %c0_i32 = arith.constant 0 : i32
    %c0_i32_0 = arith.constant 0 : i32
    %c0_i32_1 = arith.constant 0 : i32
    return %c0_i32, %c0_i32_0 : i32, i32
  }
  func.func @transform_3(%arg0: i32) -> (i32, i32) {
    %c0_i32 = arith.constant 0 : i32
    %c0_i32_0 = arith.constant 0 : i32
    %c0_i32_1 = arith.constant 0 : i32
    return %c0_i32, %c0_i32_0 : i32, i32
  }
  func.func @transform_4(%arg0: i32) -> (i32, i32) {
    %c0_i32 = arith.constant 0 : i32
    %c0_i32_0 = arith.constant 0 : i32
    %c0_i32_1 = arith.constant 0 : i32
    return %c0_i32, %c0_i32_0 : i32, i32
  }
  func.func @transform_5(%arg0: i32) -> (i32, i32, i32) {
    %c0_i32 = arith.constant 0 : i32
    %c0_i32_0 = arith.constant 0 : i32
    %c0_i32_1 = arith.constant 0 : i32
    return %arg0, %c0_i32, %c0_i32_0 : i32, i32, i32
  }
}

module attributes {stable_mosaic.version = 11 : i64} {
  func.func @_dense_kernel(%arg0: i32, %arg1: i32, %arg2: memref<16x32xbf16, #tpu.memory_space<vmem>>, %arg3: memref<32x96xbf16, #tpu.memory_space<vmem>>, %arg4: memref<1x96xf32, #tpu.memory_space<vmem>>, %arg5: memref<16x96xbf16, #tpu.memory_space<vmem>>) attributes {dimension_semantics = [#tpu.dimension_semantics<parallel>, #tpu.dimension_semantics<parallel>], iteration_bounds = array<i64: 1, 1>, scalar_prefetch = 0 : i64, scratch_operands = 0 : i64, tpu.core_type = #tpu.core_type<tc>, window_params = [{transform_indices = @transform_0, window_bounds = array<i64: 16, 32>}, {transform_indices = @transform_1, window_bounds = array<i64: 32, 96>}, {transform_indices = @transform_2, window_bounds = array<i64: 1, 96>}, {transform_indices = @transform_3, window_bounds = array<i64: 16, 96>}]} {
    %c0 = arith.constant 0 : index
    %c0_0 = arith.constant 0 : index
    %0 = vector.load %arg2[%c0, %c0_0] : memref<16x32xbf16, #tpu.memory_space<vmem>>, vector<16x32xbf16>
    %c0_1 = arith.constant 0 : index
    %c0_2 = arith.constant 0 : index
    %1 = vector.load %arg3[%c0_1, %c0_2] : memref<32x96xbf16, #tpu.memory_space<vmem>>, vector<32x96xbf16>
    %cst = arith.constant dense<0.000000e+00> : vector<16x96xf32>
    %2 = tpu.matmul %0, %1, %cst {dimension_numbers = #tpu.dot_dimension_numbers<[1], [0], [0], [1], [0, 0, 1, 1], [], []>} : vector<16x32xbf16>, vector<32x96xbf16>, vector<16x96xf32> -> vector<16x96xf32>
    %c0_3 = arith.constant 0 : index
    %c0_4 = arith.constant 0 : index
    %3 = vector.load %arg4[%c0_3, %c0_4] : memref<1x96xf32, #tpu.memory_space<vmem>>, vector<1x96xf32>
    %4 = vector.broadcast %3 : vector<1x96xf32> to vector<16x96xf32>
    %5 = arith.addf %2, %4 : vector<16x96xf32>
    %6 = arith.truncf %5 : vector<16x96xf32> to vector<16x96xbf16>
    %c0_5 = arith.constant 0 : index
    %c0_6 = arith.constant 0 : index
    %7 = vector.load %arg5[%c0_5, %c0_6] : memref<16x96xbf16, #tpu.memory_space<vmem>>, vector<16x96xbf16>
    tpu.vector_store %arg5[%c0_5, %c0_6], %6 {strides = array<i32>} : memref<16x96xbf16, #tpu.memory_space<vmem>>, vector<16x96xbf16>,
    return
  }
  func.func @transform_0(%arg0: i32, %arg1: i32) -> (i32, i32) {
    %c0_i32 = arith.constant 0 : i32
    %c0_i32_0 = arith.constant 0 : i32
    return %arg0, %c0_i32 : i32, i32
  }
  func.func @transform_1(%arg0: i32, %arg1: i32) -> (i32, i32) {
    %c0_i32 = arith.constant 0 : i32
    %c0_i32_0 = arith.constant 0 : i32
    return %c0_i32, %arg1 : i32, i32
  }
  func.func @transform_2(%arg0: i32, %arg1: i32) -> (i32, i32) {
    %c0_i32 = arith.constant 0 : i32
    %c0_i32_0 = arith.constant 0 : i32
    return %c0_i32, %arg1 : i32, i32
  }
  func.func @transform_3(%arg0: i32, %arg1: i32) -> (i32, i32) {
    %c0_i32 = arith.constant 0 : i32
    return %arg0, %arg1 : i32, i32
  }
}

module attributes {stable_mosaic.version = 11 : i64} {
  func.func @_attn_full_kernel(%arg0: i32, %arg1: memref<1x8x96xbf16, #tpu.memory_space<vmem>>, %arg2: memref<1x1x8xf32, #tpu.memory_space<vmem>>, %arg3: memref<1x8x32xbf16, #tpu.memory_space<vmem>>) attributes {dimension_semantics = [#tpu.dimension_semantics<parallel>], iteration_bounds = array<i64: 2>, scalar_prefetch = 0 : i64, scratch_operands = 0 : i64, tpu.core_type = #tpu.core_type<tc>, window_params = [{transform_indices = @transform_0, window_bounds = array<i64: 1, 8, 96>}, {transform_indices = @transform_1, window_bounds = array<i64: 1, 1, 8>}, {transform_indices = @transform_2, window_bounds = array<i64: 1, 8, 32>}]} {
    %c0 = arith.constant 0 : index
    %c0_0 = arith.constant 0 : index
    %c0_1 = arith.constant 0 : index
    %0 = vector.load %arg2[%c0, %c0_0, %c0_1] : memref<1x1x8xf32, #tpu.memory_space<vmem>>, vector<1x1x8xf32>
    %1 = vector.shape_cast %0 : vector<1x1x8xf32> to vector<1x8xf32>
    %c0_2 = arith.constant 0 : index
    %c0_3 = arith.constant 0 : index
    %c0_4 = arith.constant 0 : index
    %2 = vector.load %arg1[%c0_2, %c0_3, %c0_4] : memref<1x8x96xbf16, #tpu.memory_space<vmem>>, vector<1x8x8xbf16>
    %3 = vector.shape_cast %2 : vector<1x8x8xbf16> to vector<8x8xbf16>
    %c0_5 = arith.constant 0 : index
    %c0_6 = arith.constant 0 : index
    %c32 = arith.constant 32 : index
    %4 = vector.load %arg1[%c0_5, %c0_6, %c32] : memref<1x8x96xbf16, #tpu.memory_space<vmem>>, vector<1x8x8xbf16>
    %5 = vector.shape_cast %4 : vector<1x8x8xbf16> to vector<8x8xbf16>
    %c0_7 = arith.constant 0 : index
    %c0_8 = arith.constant 0 : index
    %c64 = arith.constant 64 : index
    %6 = vector.load %arg1[%c0_7, %c0_8, %c64] : memref<1x8x96xbf16, #tpu.memory_space<vmem>>, vector<1x8x8xbf16>
    %7 = vector.shape_cast %6 : vector<1x8x8xbf16> to vector<8x8xbf16>
    %cst = arith.constant dense<0.000000e+00> : vector<8x8xf32>
    %8 = tpu.matmul %3, %5, %cst {dimension_numbers = #tpu.dot_dimension_numbers<[1], [1], [0], [0], [0, 0, 1, 0], [], []>} : vector<8x8xbf16>, vector<8x8xbf16>, vector<8x8xf32> -> vector<8x8xf32>
    %cst_9 = arith.constant 0.353553385 : f32
    %9 = vector.broadcast %cst_9 : f32 to vector<8x8xf32>
    %10 = arith.mulf %8, %9 : vector<8x8xf32>
    %11 = vector.broadcast %1 : vector<1x8xf32> to vector<8x8xf32>
    %12 = arith.addf %10, %11 : vector<8x8xf32>
    %cst_10 = arith.constant dense<0xFF800000> : vector<8xf32>
    %13 = vector.multi_reduction <maximumf>, %12, %cst_10 [1] : vector<8x8xf32> to vector<8xf32>
    %14 = vector.shape_cast %13 : vector<8xf32> to vector<8x1xf32>
    %15 = vector.broadcast %14 : vector<8x1xf32> to vector<8x8xf32>
    %16 = arith.subf %12, %15 : vector<8x8xf32>
    %17 = math.exp %16 : vector<8x8xf32>
    %cst_11 = arith.constant dense<0.000000e+00> : vector<8xf32>
    %18 = vector.multi_reduction <add>, %17, %cst_11 [1] : vector<8x8xf32> to vector<8xf32>
    %19 = vector.shape_cast %18 : vector<8xf32> to vector<8x1xf32>
    %20 = tpu.reciprocal %19 {approx = true} : vector<8x1xf32> -> vector<8x1xf32>
    %21 = vector.broadcast %20 : vector<8x1xf32> to vector<8x8xf32>
    %22 = arith.mulf %17, %21 : vector<8x8xf32>
    %23 = arith.truncf %22 : vector<8x8xf32> to vector<8x8xbf16>
    %cst_12 = arith.constant dense<0.000000e+00> : vector<8x8xf32>
    %24 = tpu.matmul %23, %7, %cst_12 {dimension_numbers = #tpu.dot_dimension_numbers<[1], [0], [0], [1], [0, 0, 1, 1], [], []>} : vector<8x8xbf16>, vector<8x8xbf16>, vector<8x8xf32> -> vector<8x8xf32>
    %c0_13 = arith.constant 0 : index
    %c0_14 = arith.constant 0 : index
    %c8 = arith.constant 8 : index
    %25 = vector.load %arg1[%c0_13, %c0_14, %c8] : memref<1x8x96xbf16, #tpu.memory_space<vmem>>, vector<1x8x8xbf16>
    %26 = vector.shape_cast %25 : vector<1x8x8xbf16> to vector<8x8xbf16>
    %c0_15 = arith.constant 0 : index
    %c0_16 = arith.constant 0 : index
    %c40 = arith.constant 40 : index
    %27 = vector.load %arg1[%c0_15, %c0_16, %c40] : memref<1x8x96xbf16, #tpu.memory_space<vmem>>, vector<1x8x8xbf16>
    %28 = vector.shape_cast %27 : vector<1x8x8xbf16> to vector<8x8xbf16>
    %c0_17 = arith.constant 0 : index
    %c0_18 = arith.constant 0 : index
    %c72 = arith.constant 72 : index
    %29 = vector.load %arg1[%c0_17, %c0_18, %c72] : memref<1x8x96xbf16, #tpu.memory_space<vmem>>, vector<1x8x8xbf16>
    %30 = vector.shape_cast %29 : vector<1x8x8xbf16> to vector<8x8xbf16>
    %cst_19 = arith.constant dense<0.000000e+00> : vector<8x8xf32>
    %31 = tpu.matmul %26, %28, %cst_19 {dimension_numbers = #tpu.dot_dimension_numbers<[1], [1], [0], [0], [0, 0, 1, 0], [], []>} : vector<8x8xbf16>, vector<8x8xbf16>, vector<8x8xf32> -> vector<8x8xf32>
    %cst_20 = arith.constant 0.353553385 : f32
    %32 = vector.broadcast %cst_20 : f32 to vector<8x8xf32>
    %33 = arith.mulf %31, %32 : vector<8x8xf32>
    %34 = vector.broadcast %1 : vector<1x8xf32> to vector<8x8xf32>
    %35 = arith.addf %33, %34 : vector<8x8xf32>
    %cst_21 = arith.constant dense<0xFF800000> : vector<8xf32>
    %36 = vector.multi_reduction <maximumf>, %35, %cst_21 [1] : vector<8x8xf32> to vector<8xf32>
    %37 = vector.shape_cast %36 : vector<8xf32> to vector<8x1xf32>
    %38 = vector.broadcast %37 : vector<8x1xf32> to vector<8x8xf32>
    %39 = arith.subf %35, %38 : vector<8x8xf32>
    %40 = math.exp %39 : vector<8x8xf32>
    %cst_22 = arith.constant dense<0.000000e+00> : vector<8xf32>
    %41 = vector.multi_reduction <add>, %40, %cst_22 [1] : vector<8x8xf32> to vector<8xf32>
    %42 = vector.shape_cast %41 : vector<8xf32> to vector<8x1xf32>
    %43 = tpu.reciprocal %42 {approx = true} : vector<8x1xf32> -> vector<8x1xf32>
    %44 = vector.broadcast %43 : vector<8x1xf32> to vector<8x8xf32>
    %45 = arith.mulf %40, %44 : vector<8x8xf32>
    %46 = arith.truncf %45 : vector<8x8xf32> to vector<8x8xbf16>
    %cst_23 = arith.constant dense<0.000000e+00> : vector<8x8xf32>
    %47 = tpu.matmul %46, %30, %cst_23 {dimension_numbers = #tpu.dot_dimension_numbers<[1], [0], [0], [1], [0, 0, 1, 1], [], []>} : vector<8x8xbf16>, vector<8x8xbf16>, vector<8x8xf32> -> vector<8x8xf32>
    %c0_24 = arith.constant 0 : index
    %c0_25 = arith.constant 0 : index
    %c16 = arith.constant 16 : index
    %48 = vector.load %arg1[%c0_24, %c0_25, %c16] : memref<1x8x96xbf16, #tpu.memory_space<vmem>>, vector<1x8x8xbf16>
    %49 = vector.shape_cast %48 : vector<1x8x8xbf16> to vector<8x8xbf16>
    %c0_26 = arith.constant 0 : index
    %c0_27 = arith.constant 0 : index
    %c48 = arith.constant 48 : index
    %50 = vector.load %arg1[%c0_26, %c0_27, %c48] : memref<1x8x96xbf16, #tpu.memory_space<vmem>>, vector<1x8x8xbf16>
    %51 = vector.shape_cast %50 : vector<1x8x8xbf16> to vector<8x8xbf16>
    %c0_28 = arith.constant 0 : index
    %c0_29 = arith.constant 0 : index
    %c80 = arith.constant 80 : index
    %52 = vector.load %arg1[%c0_28, %c0_29, %c80] : memref<1x8x96xbf16, #tpu.memory_space<vmem>>, vector<1x8x8xbf16>
    %53 = vector.shape_cast %52 : vector<1x8x8xbf16> to vector<8x8xbf16>
    %cst_30 = arith.constant dense<0.000000e+00> : vector<8x8xf32>
    %54 = tpu.matmul %49, %51, %cst_30 {dimension_numbers = #tpu.dot_dimension_numbers<[1], [1], [0], [0], [0, 0, 1, 0], [], []>} : vector<8x8xbf16>, vector<8x8xbf16>, vector<8x8xf32> -> vector<8x8xf32>
    %cst_31 = arith.constant 0.353553385 : f32
    %55 = vector.broadcast %cst_31 : f32 to vector<8x8xf32>
    %56 = arith.mulf %54, %55 : vector<8x8xf32>
    %57 = vector.broadcast %1 : vector<1x8xf32> to vector<8x8xf32>
    %58 = arith.addf %56, %57 : vector<8x8xf32>
    %cst_32 = arith.constant dense<0xFF800000> : vector<8xf32>
    %59 = vector.multi_reduction <maximumf>, %58, %cst_32 [1] : vector<8x8xf32> to vector<8xf32>
    %60 = vector.shape_cast %59 : vector<8xf32> to vector<8x1xf32>
    %61 = vector.broadcast %60 : vector<8x1xf32> to vector<8x8xf32>
    %62 = arith.subf %58, %61 : vector<8x8xf32>
    %63 = math.exp %62 : vector<8x8xf32>
    %cst_33 = arith.constant dense<0.000000e+00> : vector<8xf32>
    %64 = vector.multi_reduction <add>, %63, %cst_33 [1] : vector<8x8xf32> to vector<8xf32>
    %65 = vector.shape_cast %64 : vector<8xf32> to vector<8x1xf32>
    %66 = tpu.reciprocal %65 {approx = true} : vector<8x1xf32> -> vector<8x1xf32>
    %67 = vector.broadcast %66 : vector<8x1xf32> to vector<8x8xf32>
    %68 = arith.mulf %63, %67 : vector<8x8xf32>
    %69 = arith.truncf %68 : vector<8x8xf32> to vector<8x8xbf16>
    %cst_34 = arith.constant dense<0.000000e+00> : vector<8x8xf32>
    %70 = tpu.matmul %69, %53, %cst_34 {dimension_numbers = #tpu.dot_dimension_numbers<[1], [0], [0], [1], [0, 0, 1, 1], [], []>} : vector<8x8xbf16>, vector<8x8xbf16>, vector<8x8xf32> -> vector<8x8xf32>
    %c0_35 = arith.constant 0 : index
    %c0_36 = arith.constant 0 : index
    %c24 = arith.constant 24 : index
    %71 = vector.load %arg1[%c0_35, %c0_36, %c24] : memref<1x8x96xbf16, #tpu.memory_space<vmem>>, vector<1x8x8xbf16>
    %72 = vector.shape_cast %71 : vector<1x8x8xbf16> to vector<8x8xbf16>
    %c0_37 = arith.constant 0 : index
    %c0_38 = arith.constant 0 : index
    %c56 = arith.constant 56 : index
    %73 = vector.load %arg1[%c0_37, %c0_38, %c56] : memref<1x8x96xbf16, #tpu.memory_space<vmem>>, vector<1x8x8xbf16>
    %74 = vector.shape_cast %73 : vector<1x8x8xbf16> to vector<8x8xbf16>
    %c0_39 = arith.constant 0 : index
    %c0_40 = arith.constant 0 : index
    %c88 = arith.constant 88 : index
    %75 = vector.load %arg1[%c0_39, %c0_40, %c88] : memref<1x8x96xbf16, #tpu.memory_space<vmem>>, vector<1x8x8xbf16>
    %76 = vector.shape_cast %75 : vector<1x8x8xbf16> to vector<8x8xbf16>
    %cst_41 = arith.constant dense<0.000000e+00> : vector<8x8xf32>
    %77 = tpu.matmul %72, %74, %cst_41 {dimension_numbers = #tpu.dot_dimension_numbers<[1], [1], [0], [0], [0, 0, 1, 0], [], []>} : vector<8x8xbf16>, vector<8x8xbf16>, vector<8x8xf32> -> vector<8x8xf32>
    %cst_42 = arith.constant 0.353553385 : f32
    %78 = vector.broadcast %cst_42 : f32 to vector<8x8xf32>
    %79 = arith.mulf %77, %78 : vector<8x8xf32>
    %80 = vector.broadcast %1 : vector<1x8xf32> to vector<8x8xf32>
    %81 = arith.addf %79, %80 : vector<8x8xf32>
    %cst_43 = arith.constant dense<0xFF800000> : vector<8xf32>
    %82 = vector.multi_reduction <maximumf>, %81, %cst_43 [1] : vector<8x8xf32> to vector<8xf32>
    %83 = vector.shape_cast %82 : vector<8xf32> to vector<8x1xf32>
    %84 = vector.broadcast %83 : vector<8x1xf32> to vector<8x8xf32>
    %85 = arith.subf %81, %84 : vector<8x8xf32>
    %86 = math.exp %85 : vector<8x8xf32>
    %cst_44 = arith.constant dense<0.000000e+00> : vector<8xf32>
    %87 = vector.multi_reduction <add>, %86, %cst_44 [1] : vector<8x8xf32> to vector<8xf32>
    %88 = vector.shape_cast %87 : vector<8xf32> to vector<8x1xf32>
    %89 = tpu.reciprocal %88 {approx = true} : vector<8x1xf32> -> vector<8x1xf32>
    %90 = vector.broadcast %89 : vector<8x1xf32> to vector<8x8xf32>
    %91 = arith.mulf %86, %90 : vector<8x8xf32>
    %92 = arith.truncf %91 : vector<8x8xf32> to vector<8x8xbf16>
    %cst_45 = arith.constant dense<0.000000e+00> : vector<8x8xf32>
    %93 = tpu.matmul %92, %76, %cst_45 {dimension_numbers = #tpu.dot_dimension_numbers<[1], [0], [0], [1], [0, 0, 1, 1], [], []>} : vector<8x8xbf16>, vector<8x8xbf16>, vector<8x8xf32> -> vector<8x8xf32>
    %94 = tpu.concatenate %24, %47, %70, %93 in 1 : vector<8x8xf32>, vector<8x8xf32>, vector<8x8xf32>, vector<8x8xf32> -> vector<8x32xf32>
    %95 = arith.truncf %94 : vector<8x32xf32> to vector<8x32xbf16>
    %c0_46 = arith.constant 0 : index
    %c0_47 = arith.constant 0 : index
    %c0_48 = arith.constant 0 : index
    %96 = vector.load %arg3[%c0_46, %c0_47, %c0_48] : memref<1x8x32xbf16, #tpu.memory_space<vmem>>, vector<1x8x32xbf16>
    %97 = vector.shape_cast %96 : vector<1x8x32xbf16> to vector<8x32xbf16>
    %98 = vector.shape_cast %95 : vector<8x32xbf16> to vector<1x8x32xbf16>
    tpu.vector_store %arg3[%c0_46, %c0_47, %c0_48], %98 {strides = array<i32>} : memref<1x8x32xbf16, #tpu.memory_space<vmem>>, vector<1x8x32xbf16>,
    return
  }
  func.func @transform_0(%arg0: i32) -> (i32, i32, i32) {
    %c0_i32 = arith.constant 0 : i32
    %c0_i32_0 = arith.constant 0 : i32
    %c0_i32_1 = arith.constant 0 : i32
    return %arg0, %c0_i32, %c0_i32_0 : i32, i32, i32
  }
  func.func @transform_1(%arg0: i32) -> (i32, i32, i32) {
    %c0_i32 = arith.constant 0 : i32
    %c0_i32_0 = arith.constant 0 : i32
    %c0_i32_1 = arith.constant 0 : i32
    return %arg0, %c0_i32, %c0_i32_0 : i32, i32, i32
  }
  func.func @transform_2(%arg0: i32) -> (i32, i32, i32) {
    %c0_i32 = arith.constant 0 : i32
    %c0_i32_0 = arith.constant 0 : i32
    %c0_i32_1 = arith.constant 0 : i32
    return %arg0, %c0_i32, %c0_i32_0 : i32, i32, i32
  }
}

module attributes {stable_mosaic.version = 11 : i64} {
  func.func @_dense_ln_kernel(%arg0: i32, %arg1: memref<16x32xbf16, #tpu.memory_space<vmem>>, %arg2: memref<32x32xbf16, #tpu.memory_space<vmem>>, %arg3: memref<1x32xf32, #tpu.memory_space<vmem>>, %arg4: memref<16x32xbf16, #tpu.memory_space<vmem>>, %arg5: memref<1x32xf32, #tpu.memory_space<vmem>>, %arg6: memref<1x32xf32, #tpu.memory_space<vmem>>, %arg7: memref<16x32xbf16, #tpu.memory_space<vmem>>) attributes {dimension_semantics = [#tpu.dimension_semantics<parallel>], iteration_bounds = array<i64: 1>, scalar_prefetch = 0 : i64, scratch_operands = 0 : i64, tpu.core_type = #tpu.core_type<tc>, window_params = [{transform_indices = @transform_0, window_bounds = array<i64: 16, 32>}, {pipeline_mode = #tpu.pipeline_mode<synchronous>, transform_indices = @transform_1, window_bounds = array<i64: 32, 32>}, {pipeline_mode = #tpu.pipeline_mode<synchronous>, transform_indices = @transform_2, window_bounds = array<i64: 1, 32>}, {transform_indices = @transform_3, window_bounds = array<i64: 16, 32>}, {pipeline_mode = #tpu.pipeline_mode<synchronous>, transform_indices = @transform_4, window_bounds = array<i64: 1, 32>}, {pipeline_mode = #tpu.pipeline_mode<synchronous>, transform_indices = @transform_5, window_bounds = array<i64: 1, 32>}, {transform_indices = @transform_6, window_bounds = array<i64: 16, 32>}]} {
    %c0 = arith.constant 0 : index
    %c0_0 = arith.constant 0 : index
    %0 = vector.load %arg1[%c0, %c0_0] : memref<16x32xbf16, #tpu.memory_space<vmem>>, vector<16x32xbf16>
    %c0_1 = arith.constant 0 : index
    %c0_2 = arith.constant 0 : index
    %1 = vector.load %arg2[%c0_1, %c0_2] : memref<32x32xbf16, #tpu.memory_space<vmem>>, vector<32x32xbf16>
    %cst = arith.constant dense<0.000000e+00> : vector<16x32xf32>
    %2 = tpu.matmul %0, %1, %cst {dimension_numbers = #tpu.dot_dimension_numbers<[1], [0], [0], [1], [0, 0, 1, 1], [], []>} : vector<16x32xbf16>, vector<32x32xbf16>, vector<16x32xf32> -> vector<16x32xf32>
    %c0_3 = arith.constant 0 : index
    %c0_4 = arith.constant 0 : index
    %3 = vector.load %arg3[%c0_3, %c0_4] : memref<1x32xf32, #tpu.memory_space<vmem>>, vector<1x32xf32>
    %4 = vector.broadcast %3 : vector<1x32xf32> to vector<16x32xf32>
    %5 = arith.addf %2, %4 : vector<16x32xf32>
    %c0_5 = arith.constant 0 : index
    %c0_6 = arith.constant 0 : index
    %6 = vector.load %arg4[%c0_5, %c0_6] : memref<16x32xbf16, #tpu.memory_space<vmem>>, vector<16x32xbf16>
    %7 = arith.extf %6 : vector<16x32xbf16> to vector<16x32xf32>
    %8 = arith.addf %5, %7 : vector<16x32xf32>
    %cst_7 = arith.constant dense<0.000000e+00> : vector<16xf32>
    %9 = vector.multi_reduction <add>, %8, %cst_7 [1] : vector<16x32xf32> to vector<16xf32>
    %10 = vector.shape_cast %9 : vector<16xf32> to vector<16x1xf32>
    %cst_8 = arith.constant 3.200000e+01 : f32
    %11 = vector.broadcast %cst_8 : f32 to vector<16x1xf32>
    %12 = arith.divf %10, %11 : vector<16x1xf32>
    %13 = vector.broadcast %12 : vector<16x1xf32> to vector<16x32xf32>
    %14 = arith.subf %8, %13 : vector<16x32xf32>
    %15 = arith.mulf %14, %14 : vector<16x32xf32>
    %cst_9 = arith.constant dense<0.000000e+00> : vector<16xf32>
    %16 = vector.multi_reduction <add>, %15, %cst_9 [1] : vector<16x32xf32> to vector<16xf32>
    %17 = vector.shape_cast %16 : vector<16xf32> to vector<16x1xf32>
    %cst_10 = arith.constant 3.200000e+01 : f32
    %18 = vector.broadcast %cst_10 : f32 to vector<16x1xf32>
    %19 = arith.divf %17, %18 : vector<16x1xf32>
    %20 = vector.broadcast %12 : vector<16x1xf32> to vector<16x32xf32>
    %21 = arith.subf %8, %20 : vector<16x32xf32>
    %cst_11 = arith.constant 9.99999996E-13 : f32
    %22 = vector.broadcast %cst_11 : f32 to vector<16x1xf32>
    %23 = arith.addf %19, %22 : vector<16x1xf32>
    %24 = math.rsqrt %23 : vector<16x1xf32>
    %25 = vector.broadcast %24 : vector<16x1xf32> to vector<16x32xf32>
    %26 = arith.mulf %21, %25 : vector<16x32xf32>
    %c0_12 = arith.constant 0 : index
    %c0_13 = arith.constant 0 : index
    %27 = vector.load %arg5[%c0_12, %c0_13] : memref<1x32xf32, #tpu.memory_space<vmem>>, vector<1x32xf32>
    %28 = vector.broadcast %27 : vector<1x32xf32> to vector<16x32xf32>
    %29 = arith.mulf %26, %28 : vector<16x32xf32>
    %c0_14 = arith.constant 0 : index
    %c0_15 = arith.constant 0 : index
    %30 = vector.load %arg6[%c0_14, %c0_15] : memref<1x32xf32, #tpu.memory_space<vmem>>, vector<1x32xf32>
    %31 = vector.broadcast %30 : vector<1x32xf32> to vector<16x32xf32>
    %32 = arith.addf %29, %31 : vector<16x32xf32>
    %33 = arith.truncf %32 : vector<16x32xf32> to vector<16x32xbf16>
    %c0_16 = arith.constant 0 : index
    %c0_17 = arith.constant 0 : index
    %34 = vector.load %arg7[%c0_16, %c0_17] : memref<16x32xbf16, #tpu.memory_space<vmem>>, vector<16x32xbf16>
    tpu.vector_store %arg7[%c0_16, %c0_17], %33 {strides = array<i32>} : memref<16x32xbf16, #tpu.memory_space<vmem>>, vector<16x32xbf16>,
    return
  }
  func.func @transform_0(%arg0: i32) -> (i32, i32) {
    %c0_i32 = arith.constant 0 : i32
    %c0_i32_0 = arith.constant 0 : i32
    return %arg0, %c0_i32 : i32, i32
  }
  func.func @transform_1(%arg0: i32) -> (i32, i32) {
    %c0_i32 = arith.constant 0 : i32
    %c0_i32_0 = arith.constant 0 : i32
    %c0_i32_1 = arith.constant 0 : i32
    return %c0_i32, %c0_i32_0 : i32, i32
  }
  func.func @transform_2(%arg0: i32) -> (i32, i32) {
    %c0_i32 = arith.constant 0 : i32
    %c0_i32_0 = arith.constant 0 : i32
    %c0_i32_1 = arith.constant 0 : i32
    return %c0_i32, %c0_i32_0 : i32, i32
  }
  func.func @transform_3(%arg0: i32) -> (i32, i32) {
    %c0_i32 = arith.constant 0 : i32
    %c0_i32_0 = arith.constant 0 : i32
    return %arg0, %c0_i32 : i32, i32
  }
  func.func @transform_4(%arg0: i32) -> (i32, i32) {
    %c0_i32 = arith.constant 0 : i32
    %c0_i32_0 = arith.constant 0 : i32
    %c0_i32_1 = arith.constant 0 : i32
    return %c0_i32, %c0_i32_0 : i32, i32
  }
  func.func @transform_5(%arg0: i32) -> (i32, i32) {
    %c0_i32 = arith.constant 0 : i32
    %c0_i32_0 = arith.constant 0 : i32
    %c0_i32_1 = arith.constant 0 : i32
    return %c0_i32, %c0_i32_0 : i32, i32
  }
  func.func @transform_6(%arg0: i32) -> (i32, i32) {
    %c0_i32 = arith.constant 0 : i32
    %c0_i32_0 = arith.constant 0 : i32
    return %arg0, %c0_i32 : i32, i32
  }
}

module attributes {stable_mosaic.version = 11 : i64} {
  func.func @_dense_kernel(%arg0: i32, %arg1: i32, %arg2: memref<16x32xbf16, #tpu.memory_space<vmem>>, %arg3: memref<32x64xbf16, #tpu.memory_space<vmem>>, %arg4: memref<1x64xf32, #tpu.memory_space<vmem>>, %arg5: memref<16x64xbf16, #tpu.memory_space<vmem>>) attributes {dimension_semantics = [#tpu.dimension_semantics<parallel>, #tpu.dimension_semantics<parallel>], iteration_bounds = array<i64: 1, 1>, scalar_prefetch = 0 : i64, scratch_operands = 0 : i64, tpu.core_type = #tpu.core_type<tc>, window_params = [{transform_indices = @transform_0, window_bounds = array<i64: 16, 32>}, {transform_indices = @transform_1, window_bounds = array<i64: 32, 64>}, {transform_indices = @transform_2, window_bounds = array<i64: 1, 64>}, {transform_indices = @transform_3, window_bounds = array<i64: 16, 64>}]} {
    %c0 = arith.constant 0 : index
    %c0_0 = arith.constant 0 : index
    %0 = vector.load %arg2[%c0, %c0_0] : memref<16x32xbf16, #tpu.memory_space<vmem>>, vector<16x32xbf16>
    %c0_1 = arith.constant 0 : index
    %c0_2 = arith.constant 0 : index
    %1 = vector.load %arg3[%c0_1, %c0_2] : memref<32x64xbf16, #tpu.memory_space<vmem>>, vector<32x64xbf16>
    %cst = arith.constant dense<0.000000e+00> : vector<16x64xf32>
    %2 = tpu.matmul %0, %1, %cst {dimension_numbers = #tpu.dot_dimension_numbers<[1], [0], [0], [1], [0, 0, 1, 1], [], []>} : vector<16x32xbf16>, vector<32x64xbf16>, vector<16x64xf32> -> vector<16x64xf32>
    %c0_3 = arith.constant 0 : index
    %c0_4 = arith.constant 0 : index
    %3 = vector.load %arg4[%c0_3, %c0_4] : memref<1x64xf32, #tpu.memory_space<vmem>>, vector<1x64xf32>
    %4 = vector.broadcast %3 : vector<1x64xf32> to vector<16x64xf32>
    %5 = arith.addf %2, %4 : vector<16x64xf32>
    %cst_5 = arith.constant 5.000000e-01 : f32
    %6 = vector.broadcast %cst_5 : f32 to vector<16x64xf32>
    %7 = arith.mulf %6, %5 : vector<16x64xf32>
    %cst_6 = arith.constant 4.471500e-02 : f32
    %8 = vector.broadcast %cst_6 : f32 to vector<16x64xf32>
    %9 = arith.mulf %8, %5 : vector<16x64xf32>
    %10 = arith.mulf %9, %5 : vector<16x64xf32>
    %11 = arith.mulf %10, %5 : vector<16x64xf32>
    %12 = arith.addf %5, %11 : vector<16x64xf32>
    %cst_7 = arith.constant 0.797884583 : f32
    %13 = vector.broadcast %cst_7 : f32 to vector<16x64xf32>
    %14 = arith.mulf %13, %12 : vector<16x64xf32>
    %15 = math.tanh %14 : vector<16x64xf32>
    %cst_8 = arith.constant 1.000000e+00 : f32
    %16 = vector.broadcast %cst_8 : f32 to vector<16x64xf32>
    %17 = arith.addf %16, %15 : vector<16x64xf32>
    %18 = arith.mulf %7, %17 : vector<16x64xf32>
    %19 = arith.truncf %18 : vector<16x64xf32> to vector<16x64xbf16>
    %c0_9 = arith.constant 0 : index
    %c0_10 = arith.constant 0 : index
    %20 = vector.load %arg5[%c0_9, %c0_10] : memref<16x64xbf16, #tpu.memory_space<vmem>>, vector<16x64xbf16>
    tpu.vector_store %arg5[%c0_9, %c0_10], %19 {strides = array<i32>} : memref<16x64xbf16, #tpu.memory_space<vmem>>, vector<16x64xbf16>,
    return
  }
  func.func @transform_0(%arg0: i32, %arg1: i32) -> (i32, i32) {
    %c0_i32 = arith.constant 0 : i32
    %c0_i32_0 = arith.constant 0 : i32
    return %arg0, %c0_i32 : i32, i32
  }
  func.func @transform_1(%arg0: i32, %arg1: i32) -> (i32, i32) {
    %c0_i32 = arith.constant 0 : i32
    %c0_i32_0 = arith.constant 0 : i32
    return %c0_i32, %arg1 : i32, i32
  }
  func.func @transform_2(%arg0: i32, %arg1: i32) -> (i32, i32) {
    %c0_i32 = arith.constant 0 : i32
    %c0_i32_0 = arith.constant 0 : i32
    return %c0_i32, %arg1 : i32, i32
  }
  func.func @transform_3(%arg0: i32, %arg1: i32) -> (i32, i32) {
    %c0_i32 = arith.constant 0 : i32
    return %arg0, %arg1 : i32, i32
  }
}

module attributes {stable_mosaic.version = 11 : i64} {
  func.func @_dense_kernel(%arg0: i32, %arg1: i32, %arg2: memref<16x32xbf16, #tpu.memory_space<vmem>>, %arg3: memref<32x128xbf16, #tpu.memory_space<vmem>>, %arg4: memref<1x128xf32, #tpu.memory_space<vmem>>, %arg5: memref<16x128xbf16, #tpu.memory_space<vmem>>) attributes {dimension_semantics = [#tpu.dimension_semantics<parallel>, #tpu.dimension_semantics<parallel>], iteration_bounds = array<i64: 1, 1>, scalar_prefetch = 0 : i64, scratch_operands = 0 : i64, tpu.core_type = #tpu.core_type<tc>, window_params = [{transform_indices = @transform_0, window_bounds = array<i64: 16, 32>}, {transform_indices = @transform_1, window_bounds = array<i64: 32, 128>}, {transform_indices = @transform_2, window_bounds = array<i64: 1, 128>}, {transform_indices = @transform_3, window_bounds = array<i64: 16, 128>}]} {
    %c0 = arith.constant 0 : index
    %c0_0 = arith.constant 0 : index
    %0 = vector.load %arg2[%c0, %c0_0] : memref<16x32xbf16, #tpu.memory_space<vmem>>, vector<16x32xbf16>
    %c0_1 = arith.constant 0 : index
    %c0_2 = arith.constant 0 : index
    %1 = vector.load %arg3[%c0_1, %c0_2] : memref<32x128xbf16, #tpu.memory_space<vmem>>, vector<32x128xbf16>
    %cst = arith.constant dense<0.000000e+00> : vector<16x128xf32>
    %2 = tpu.matmul %0, %1, %cst {dimension_numbers = #tpu.dot_dimension_numbers<[1], [0], [0], [1], [0, 0, 1, 1], [], []>} : vector<16x32xbf16>, vector<32x128xbf16>, vector<16x128xf32> -> vector<16x128xf32>
    %c0_3 = arith.constant 0 : index
    %c0_4 = arith.constant 0 : index
    %3 = vector.load %arg4[%c0_3, %c0_4] : memref<1x128xf32, #tpu.memory_space<vmem>>, vector<1x128xf32>
    %4 = vector.broadcast %3 : vector<1x128xf32> to vector<16x128xf32>
    %5 = arith.addf %2, %4 : vector<16x128xf32>
    %6 = arith.truncf %5 : vector<16x128xf32> to vector<16x128xbf16>
    %c0_5 = arith.constant 0 : index
    %c0_6 = arith.constant 0 : index
    %7 = vector.load %arg5[%c0_5, %c0_6] : memref<16x128xbf16, #tpu.memory_space<vmem>>, vector<16x128xbf16>
    tpu.vector_store %arg5[%c0_5, %c0_6], %6 {strides = array<i32>} : memref<16x128xbf16, #tpu.memory_space<vmem>>, vector<16x128xbf16>,
    return
  }
  func.func @transform_0(%arg0: i32, %arg1: i32) -> (i32, i32) {
    %c0_i32 = arith.constant 0 : i32
    %c0_i32_0 = arith.constant 0 : i32
    return %arg0, %c0_i32 : i32, i32
  }
  func.func @transform_1(%arg0: i32, %arg1: i32) -> (i32, i32) {
    %c0_i32 = arith.constant 0 : i32
    %c0_i32_0 = arith.constant 0 : i32
    return %c0_i32, %arg1 : i32, i32
  }
  func.func @transform_2(%arg0: i32, %arg1: i32) -> (i32, i32) {
    %c0_i32 = arith.constant 0 : i32
    %c0_i32_0 = arith.constant 0 : i32
    return %c0_i32, %arg1 : i32, i32
  }
  func.func @transform_3(%arg0: i32, %arg1: i32) -> (i32, i32) {
    %c0_i32 = arith.constant 0 : i32
    return %arg0, %arg1 : i32, i32
  }
}

module attributes {stable_mosaic.version = 11 : i64} {
  func.func @_dense_ln_kernel(%arg0: i32, %arg1: memref<16x64xbf16, #tpu.memory_space<vmem>>, %arg2: memref<64x32xbf16, #tpu.memory_space<vmem>>, %arg3: memref<1x32xf32, #tpu.memory_space<vmem>>, %arg4: memref<16x32xbf16, #tpu.memory_space<vmem>>, %arg5: memref<1x32xf32, #tpu.memory_space<vmem>>, %arg6: memref<1x32xf32, #tpu.memory_space<vmem>>, %arg7: memref<16x32xbf16, #tpu.memory_space<vmem>>) attributes {dimension_semantics = [#tpu.dimension_semantics<parallel>], iteration_bounds = array<i64: 1>, scalar_prefetch = 0 : i64, scratch_operands = 0 : i64, tpu.core_type = #tpu.core_type<tc>, window_params = [{transform_indices = @transform_0, window_bounds = array<i64: 16, 64>}, {pipeline_mode = #tpu.pipeline_mode<synchronous>, transform_indices = @transform_1, window_bounds = array<i64: 64, 32>}, {pipeline_mode = #tpu.pipeline_mode<synchronous>, transform_indices = @transform_2, window_bounds = array<i64: 1, 32>}, {transform_indices = @transform_3, window_bounds = array<i64: 16, 32>}, {pipeline_mode = #tpu.pipeline_mode<synchronous>, transform_indices = @transform_4, window_bounds = array<i64: 1, 32>}, {pipeline_mode = #tpu.pipeline_mode<synchronous>, transform_indices = @transform_5, window_bounds = array<i64: 1, 32>}, {transform_indices = @transform_6, window_bounds = array<i64: 16, 32>}]} {
    %c0 = arith.constant 0 : index
    %c0_0 = arith.constant 0 : index
    %0 = vector.load %arg1[%c0, %c0_0] : memref<16x64xbf16, #tpu.memory_space<vmem>>, vector<16x64xbf16>
    %c0_1 = arith.constant 0 : index
    %c0_2 = arith.constant 0 : index
    %1 = vector.load %arg2[%c0_1, %c0_2] : memref<64x32xbf16, #tpu.memory_space<vmem>>, vector<64x32xbf16>
    %cst = arith.constant dense<0.000000e+00> : vector<16x32xf32>
    %2 = tpu.matmul %0, %1, %cst {dimension_numbers = #tpu.dot_dimension_numbers<[1], [0], [0], [1], [0, 0, 1, 1], [], []>} : vector<16x64xbf16>, vector<64x32xbf16>, vector<16x32xf32> -> vector<16x32xf32>
    %c0_3 = arith.constant 0 : index
    %c0_4 = arith.constant 0 : index
    %3 = vector.load %arg3[%c0_3, %c0_4] : memref<1x32xf32, #tpu.memory_space<vmem>>, vector<1x32xf32>
    %4 = vector.broadcast %3 : vector<1x32xf32> to vector<16x32xf32>
    %5 = arith.addf %2, %4 : vector<16x32xf32>
    %c0_5 = arith.constant 0 : index
    %c0_6 = arith.constant 0 : index
    %6 = vector.load %arg4[%c0_5, %c0_6] : memref<16x32xbf16, #tpu.memory_space<vmem>>, vector<16x32xbf16>
    %7 = arith.extf %6 : vector<16x32xbf16> to vector<16x32xf32>
    %8 = arith.addf %5, %7 : vector<16x32xf32>
    %cst_7 = arith.constant dense<0.000000e+00> : vector<16xf32>
    %9 = vector.multi_reduction <add>, %8, %cst_7 [1] : vector<16x32xf32> to vector<16xf32>
    %10 = vector.shape_cast %9 : vector<16xf32> to vector<16x1xf32>
    %cst_8 = arith.constant 3.200000e+01 : f32
    %11 = vector.broadcast %cst_8 : f32 to vector<16x1xf32>
    %12 = arith.divf %10, %11 : vector<16x1xf32>
    %13 = vector.broadcast %12 : vector<16x1xf32> to vector<16x32xf32>
    %14 = arith.subf %8, %13 : vector<16x32xf32>
    %15 = arith.mulf %14, %14 : vector<16x32xf32>
    %cst_9 = arith.constant dense<0.000000e+00> : vector<16xf32>
    %16 = vector.multi_reduction <add>, %15, %cst_9 [1] : vector<16x32xf32> to vector<16xf32>
    %17 = vector.shape_cast %16 : vector<16xf32> to vector<16x1xf32>
    %cst_10 = arith.constant 3.200000e+01 : f32
    %18 = vector.broadcast %cst_10 : f32 to vector<16x1xf32>
    %19 = arith.divf %17, %18 : vector<16x1xf32>
    %20 = vector.broadcast %12 : vector<16x1xf32> to vector<16x32xf32>
    %21 = arith.subf %8, %20 : vector<16x32xf32>
    %cst_11 = arith.constant 9.99999996E-13 : f32
    %22 = vector.broadcast %cst_11 : f32 to vector<16x1xf32>
    %23 = arith.addf %19, %22 : vector<16x1xf32>
    %24 = math.rsqrt %23 : vector<16x1xf32>
    %25 = vector.broadcast %24 : vector<16x1xf32> to vector<16x32xf32>
    %26 = arith.mulf %21, %25 : vector<16x32xf32>
    %c0_12 = arith.constant 0 : index
    %c0_13 = arith.constant 0 : index
    %27 = vector.load %arg5[%c0_12, %c0_13] : memref<1x32xf32, #tpu.memory_space<vmem>>, vector<1x32xf32>
    %28 = vector.broadcast %27 : vector<1x32xf32> to vector<16x32xf32>
    %29 = arith.mulf %26, %28 : vector<16x32xf32>
    %c0_14 = arith.constant 0 : index
    %c0_15 = arith.constant 0 : index
    %30 = vector.load %arg6[%c0_14, %c0_15] : memref<1x32xf32, #tpu.memory_space<vmem>>, vector<1x32xf32>
    %31 = vector.broadcast %30 : vector<1x32xf32> to vector<16x32xf32>
    %32 = arith.addf %29, %31 : vector<16x32xf32>
    %33 = arith.truncf %32 : vector<16x32xf32> to vector<16x32xbf16>
    %c0_16 = arith.constant 0 : index
    %c0_17 = arith.constant 0 : index
    %34 = vector.load %arg7[%c0_16, %c0_17] : memref<16x32xbf16, #tpu.memory_space<vmem>>, vector<16x32xbf16>
    tpu.vector_store %arg7[%c0_16, %c0_17], %33 {strides = array<i32>} : memref<16x32xbf16, #tpu.memory_space<vmem>>, vector<16x32xbf16>,
    return
  }
  func.func @transform_0(%arg0: i32) -> (i32, i32) {
    %c0_i32 = arith.constant 0 : i32
    %c0_i32_0 = arith.constant 0 : i32
    return %arg0, %c0_i32 : i32, i32
  }
  func.func @transform_1(%arg0: i32) -> (i32, i32) {
    %c0_i32 = arith.constant 0 : i32
    %c0_i32_0 = arith.constant 0 : i32
    %c0_i32_1 = arith.constant 0 : i32
    return %c0_i32, %c0_i32_0 : i32, i32
  }
  func.func @transform_2(%arg0: i32) -> (i32, i32) {
    %c0_i32 = arith.constant 0 : i32
    %c0_i32_0 = arith.constant 0 : i32
    %c0_i32_1 = arith.constant 0 : i32
    return %c0_i32, %c0_i32_0 : i32, i32
  }
  func.func @transform_3(%arg0: i32) -> (i32, i32) {
    %c0_i32 = arith.constant 0 : i32
    %c0_i32_0 = arith.constant 0 : i32
    return %arg0, %c0_i32 : i32, i32
  }
  func.func @transform_4(%arg0: i32) -> (i32, i32) {
    %c0_i32 = arith.constant 0 : i32
    %c0_i32_0 = arith.constant 0 : i32
    %c0_i32_1 = arith.constant 0 : i32
    return %c0_i32, %c0_i32_0 : i32, i32
  }
  func.func @transform_5(%arg0: i32) -> (i32, i32) {
    %c0_i32 = arith.constant 0 : i32
    %c0_i32_0 = arith.constant 0 : i32
    %c0_i32_1 = arith.constant 0 : i32
    return %c0_i32, %c0_i32_0 : i32, i32
  }
  func.func @transform_6(%arg0: i32) -> (i32, i32) {
    %c0_i32 = arith.constant 0 : i32
    %c0_i32_0 = arith.constant 0 : i32
    return %arg0, %c0_i32 : i32, i32
  }
}

module attributes {stable_mosaic.version = 11 : i64} {
  func.func @_dense_ln_kernel(%arg0: i32, %arg1: memref<16x32xbf16, #tpu.memory_space<vmem>>, %arg2: memref<32x32xbf16, #tpu.memory_space<vmem>>, %arg3: memref<1x32xf32, #tpu.memory_space<vmem>>, %arg4: memref<1x32xf32, #tpu.memory_space<vmem>>, %arg5: memref<1x32xf32, #tpu.memory_space<vmem>>, %arg6: memref<16x32xbf16, #tpu.memory_space<vmem>>) attributes {dimension_semantics = [#tpu.dimension_semantics<parallel>], iteration_bounds = array<i64: 1>, scalar_prefetch = 0 : i64, scratch_operands = 0 : i64, tpu.core_type = #tpu.core_type<tc>, window_params = [{transform_indices = @transform_0, window_bounds = array<i64: 16, 32>}, {pipeline_mode = #tpu.pipeline_mode<synchronous>, transform_indices = @transform_1, window_bounds = array<i64: 32, 32>}, {pipeline_mode = #tpu.pipeline_mode<synchronous>, transform_indices = @transform_2, window_bounds = array<i64: 1, 32>}, {pipeline_mode = #tpu.pipeline_mode<synchronous>, transform_indices = @transform_3, window_bounds = array<i64: 1, 32>}, {pipeline_mode = #tpu.pipeline_mode<synchronous>, transform_indices = @transform_4, window_bounds = array<i64: 1, 32>}, {transform_indices = @transform_5, window_bounds = array<i64: 16, 32>}]} {
    %c0 = arith.constant 0 : index
    %c0_0 = arith.constant 0 : index
    %0 = vector.load %arg1[%c0, %c0_0] : memref<16x32xbf16, #tpu.memory_space<vmem>>, vector<16x32xbf16>
    %c0_1 = arith.constant 0 : index
    %c0_2 = arith.constant 0 : index
    %1 = vector.load %arg2[%c0_1, %c0_2] : memref<32x32xbf16, #tpu.memory_space<vmem>>, vector<32x32xbf16>
    %cst = arith.constant dense<0.000000e+00> : vector<16x32xf32>
    %2 = tpu.matmul %0, %1, %cst {dimension_numbers = #tpu.dot_dimension_numbers<[1], [0], [0], [1], [0, 0, 1, 1], [], []>} : vector<16x32xbf16>, vector<32x32xbf16>, vector<16x32xf32> -> vector<16x32xf32>
    %c0_3 = arith.constant 0 : index
    %c0_4 = arith.constant 0 : index
    %3 = vector.load %arg3[%c0_3, %c0_4] : memref<1x32xf32, #tpu.memory_space<vmem>>, vector<1x32xf32>
    %4 = vector.broadcast %3 : vector<1x32xf32> to vector<16x32xf32>
    %5 = arith.addf %2, %4 : vector<16x32xf32>
    %cst_5 = arith.constant 5.000000e-01 : f32
    %6 = vector.broadcast %cst_5 : f32 to vector<16x32xf32>
    %7 = arith.mulf %6, %5 : vector<16x32xf32>
    %cst_6 = arith.constant 4.471500e-02 : f32
    %8 = vector.broadcast %cst_6 : f32 to vector<16x32xf32>
    %9 = arith.mulf %8, %5 : vector<16x32xf32>
    %10 = arith.mulf %9, %5 : vector<16x32xf32>
    %11 = arith.mulf %10, %5 : vector<16x32xf32>
    %12 = arith.addf %5, %11 : vector<16x32xf32>
    %cst_7 = arith.constant 0.797884583 : f32
    %13 = vector.broadcast %cst_7 : f32 to vector<16x32xf32>
    %14 = arith.mulf %13, %12 : vector<16x32xf32>
    %15 = math.tanh %14 : vector<16x32xf32>
    %cst_8 = arith.constant 1.000000e+00 : f32
    %16 = vector.broadcast %cst_8 : f32 to vector<16x32xf32>
    %17 = arith.addf %16, %15 : vector<16x32xf32>
    %18 = arith.mulf %7, %17 : vector<16x32xf32>
    %cst_9 = arith.constant dense<0.000000e+00> : vector<16xf32>
    %19 = vector.multi_reduction <add>, %18, %cst_9 [1] : vector<16x32xf32> to vector<16xf32>
    %20 = vector.shape_cast %19 : vector<16xf32> to vector<16x1xf32>
    %cst_10 = arith.constant 3.200000e+01 : f32
    %21 = vector.broadcast %cst_10 : f32 to vector<16x1xf32>
    %22 = arith.divf %20, %21 : vector<16x1xf32>
    %23 = vector.broadcast %22 : vector<16x1xf32> to vector<16x32xf32>
    %24 = arith.subf %18, %23 : vector<16x32xf32>
    %25 = arith.mulf %24, %24 : vector<16x32xf32>
    %cst_11 = arith.constant dense<0.000000e+00> : vector<16xf32>
    %26 = vector.multi_reduction <add>, %25, %cst_11 [1] : vector<16x32xf32> to vector<16xf32>
    %27 = vector.shape_cast %26 : vector<16xf32> to vector<16x1xf32>
    %cst_12 = arith.constant 3.200000e+01 : f32
    %28 = vector.broadcast %cst_12 : f32 to vector<16x1xf32>
    %29 = arith.divf %27, %28 : vector<16x1xf32>
    %30 = vector.broadcast %22 : vector<16x1xf32> to vector<16x32xf32>
    %31 = arith.subf %18, %30 : vector<16x32xf32>
    %cst_13 = arith.constant 9.99999996E-13 : f32
    %32 = vector.broadcast %cst_13 : f32 to vector<16x1xf32>
    %33 = arith.addf %29, %32 : vector<16x1xf32>
    %34 = math.rsqrt %33 : vector<16x1xf32>
    %35 = vector.broadcast %34 : vector<16x1xf32> to vector<16x32xf32>
    %36 = arith.mulf %31, %35 : vector<16x32xf32>
    %c0_14 = arith.constant 0 : index
    %c0_15 = arith.constant 0 : index
    %37 = vector.load %arg4[%c0_14, %c0_15] : memref<1x32xf32, #tpu.memory_space<vmem>>, vector<1x32xf32>
    %38 = vector.broadcast %37 : vector<1x32xf32> to vector<16x32xf32>
    %39 = arith.mulf %36, %38 : vector<16x32xf32>
    %c0_16 = arith.constant 0 : index
    %c0_17 = arith.constant 0 : index
    %40 = vector.load %arg5[%c0_16, %c0_17] : memref<1x32xf32, #tpu.memory_space<vmem>>, vector<1x32xf32>
    %41 = vector.broadcast %40 : vector<1x32xf32> to vector<16x32xf32>
    %42 = arith.addf %39, %41 : vector<16x32xf32>
    %43 = arith.truncf %42 : vector<16x32xf32> to vector<16x32xbf16>
    %c0_18 = arith.constant 0 : index
    %c0_19 = arith.constant 0 : index
    %44 = vector.load %arg6[%c0_18, %c0_19] : memref<16x32xbf16, #tpu.memory_space<vmem>>, vector<16x32xbf16>
    tpu.vector_store %arg6[%c0_18, %c0_19], %43 {strides = array<i32>} : memref<16x32xbf16, #tpu.memory_space<vmem>>, vector<16x32xbf16>,
    return
  }
  func.func @transform_0(%arg0: i32) -> (i32, i32) {
    %c0_i32 = arith.constant 0 : i32
    %c0_i32_0 = arith.constant 0 : i32
    return %arg0, %c0_i32 : i32, i32
  }
  func.func @transform_1(%arg0: i32) -> (i32, i32) {
    %c0_i32 = arith.constant 0 : i32
    %c0_i32_0 = arith.constant 0 : i32
    %c0_i32_1 = arith.constant 0 : i32
    return %c0_i32, %c0_i32_0 : i32, i32
  }
  func.func @transform_2(%arg0: i32) -> (i32, i32) {
    %c0_i32 = arith.constant 0 : i32
    %c0_i32_0 = arith.constant 0 : i32
    %c0_i32_1 = arith.constant 0 : i32
    return %c0_i32, %c0_i32_0 : i32, i32
  }
  func.func @transform_3(%arg0: i32) -> (i32, i32) {
    %c0_i32 = arith.constant 0 : i32
    %c0_i32_0 = arith.constant 0 : i32
    %c0_i32_1 = arith.constant 0 : i32
    return %c0_i32, %c0_i32_0 : i32, i32
  }
  func.func @transform_4(%arg0: i32) -> (i32, i32) {
    %c0_i32 = arith.constant 0 : i32
    %c0_i32_0 = arith.constant 0 : i32
    %c0_i32_1 = arith.constant 0 : i32
    return %c0_i32, %c0_i32_0 : i32, i32
  }
  func.func @transform_5(%arg0: i32) -> (i32, i32) {
    %c0_i32 = arith.constant 0 : i32
    %c0_i32_0 = arith.constant 0 : i32
    return %arg0, %c0_i32 : i32, i32
  }
}

</mosaic_0001>

<llo_original>
// kernel: _lambda_.14
$region0: #{_lambda_.14}
  #allocation0 [shape = 'u32[]', space=smem, size = 0x4, offset = 0x4, fixed_abs, tag = 'smem constant byte address 0x4 - core index']
  #allocation1 [shape = 'u32[144,128]{1,0:T(1,128)}', space=vmem, size = 0x12000, scoped, tag = 'internal scratch']
  %s0 = inlined_call_operand.vmem [shape: bf16[16,32], index: 0, kind: input, shape index: {}]
  %s1 = inlined_call_operand.vmem [shape: bf16[32,96], index: 1, kind: input, shape index: {}]
  %s2 = inlined_call_operand.vmem [shape: f32[1,96], index: 2, kind: input, shape index: {}]
  %s3 = inlined_call_operand.vmem [shape: bf16[16,96], index: 3, kind: output, shape index: {}]
  %s4 = sld [smem:[#allocation0]]
  $region22: #{_lambda_.14} parent=0
    _
  %s6 = ssub.s32 1, %s4
  %s7 = scalar_select 0, %s6, %s4
  // Predicated region
  $region2: #{_lambda_.14} parent=0 // pred_check
    _
  $region3: #{_lambda_.14} parent=0 // pred_check_branch
    %9 = sbr.rel (0) target = $region5
  $region4: #{_lambda_.14} parent=0 // pred_region
    _
  $region5: #{_lambda_.14} parent=0 // pred_fallthru
    _
  // Predicated region
  $region6: #{_lambda_.14} parent=0 // pred_check
    _
  $region7: #{_lambda_.14} parent=0 // pred_check_branch
    %11 = sbr.rel (0) target = $region9
  $region8: #{_lambda_.14} parent=0 // pred_region
    _
  $region9: #{_lambda_.14} parent=0 // pred_fallthru
    _
  // Predicated region
  $region10: #{_lambda_.14} parent=0 // pred_check
    _
  $region11: #{_lambda_.14} parent=0 // pred_check_branch
    %13 = sbr.rel (0) target = $region13
  $region12: #{_lambda_.14} parent=0 // pred_region
    _
  $region13: #{_lambda_.14} parent=0 // pred_fallthru
    _
  %v15 = vld [vmem:[%s0] sm:$0xf]
  %v16 = vld [vmem:[%s0 + $0x4] sm:$0xf]
  %v17 = vld [vmem:[%s1] sm:$0xf]
  %v18 = vld [vmem:[%s1 + $0x4] sm:$0xf]
  %v19 = vld [vmem:[%s1 + $0x8] sm:$0xf]
  %v20 = vld [vmem:[%s1 + $0xc] sm:$0xf]
  %v21 = vld [vmem:[%s2] sm:$0x1]
  %v23 = vlaneseq
  %v24 = vshrl.u32 %v23, 7
  %v25 = vsub.s32 0, %v24
  %v26 = vrot.slane %v21, %v25
  %v30 = vunpack.c.l.b16 %v15
  %v31 = vunpack.c.l.b16 %v16
  %v32 = vpack.c.b16 %v31, %v30
  %v37 = vunpack.c.l.b16 %v17
  %v38 = vunpack.c.l.b16 %v18
  %v39 = vunpack.c.l.b16 %v19
  %v40 = vunpack.c.l.b16 %v20
  %v41 = vpack.c.b16 %v38, %v37
  %v42 = vpack.c.b16 %v40, %v39
  %vm45 = vcmask 261120
  %v47 = vsel %vm45, %v32, 0
  %49 = vmatprep.subr.bf16.mxu0 0
  %50 = vmatpush1.bf16.msra.mxu0 %v41
  %51 = vmatprep.subr.bf16.mxu0 0
  %52 = vmatpush1.bf16.msra.mxu0 %v42
  %53 = vmatprep.subr.bf16.mxu0 0
  %54 = vmatpush1.bf16.msra.mxu0 0
  %55 = vmatprep.subr.bf16.mxu0 0
  %56 = vmatpush1.bf16.msra.mxu0 0
  %57 = vmatprep.subr.bf16.mxu0 0
  %58 = vmatpush1.bf16.msra.mxu0 0
  %59 = vmatprep.subr.bf16.mxu0 0
  %60 = vmatpush1.bf16.msra.mxu0 0
  %61 = vmatprep.subr.bf16.mxu0 0
  %62 = vmatpush1.bf16.msra.mxu0 0
  %63 = vmatprep.subr.bf16.mxu0 0
  %64 = vmatpush1.bf16.msra.mxu0 0
  %65 = vmatprep.subr.bf16.mxu0 0
  %66 = vmatpush1.bf16.msra.mxu0 0
  %67 = vmatprep.subr.bf16.mxu0 0
  %68 = vmatpush1.bf16.msra.mxu0 0
  %69 = vmatprep.subr.bf16.mxu0 0
  %70 = vmatpush1.bf16.msra.mxu0 0
  %71 = vmatprep.subr.bf16.mxu0 0
  %72 = vmatpush1.bf16.msra.mxu0 0
  %73 = vmatprep.subr.bf16.mxu0 0
  %74 = vmatpush1.bf16.msra.mxu0 0
  %75 = vmatprep.subr.bf16.mxu0 0
  %76 = vmatpush1.bf16.msra.mxu0 0
  %77 = vmatprep.subr.bf16.mxu0 0
  %78 = vmatpush1.bf16.msra.mxu0 0
  %79 = vmatprep.subr.bf16.mxu0 0
  %80 = vmatpush1.bf16.msra.mxu0 0
  %81 = vmatprep.mubr.bf16.mxu0 0
  %82 = vmatmul.mubr.bf16.gmra.mrb[0].mxu0 %v47
  %v83 = vpop.f32.mrb[0].mxu0
  %v84 = vadd.f32 %v26, %v83
  %v85 = vpop.f32.mrb[0].mxu0
  %v86 = vpop.f32.mrb[0].mxu0
  %v87 = vadd.f32 %v26, %v86
  %v88 = vpop.f32.mrb[0].mxu0
  %89 = vdwg.mxu0
  %v90 = vpack.c.bf16 %v87, %v84
  %v92 = vunpack.c.l.b16 %v90
  %v93 = vunpack.c.h.b16 %v90
  %v94 = vpack.c.b16 %v92, %v92
  %v95 = vpack.c.b16 %v93, %v93
  %vm98 = vcmask 781312
  %99 = vst.msk [vmem:[%s3] sm:$0xf] %vm98, %v94
  %100 = vst.msk [vmem:[%s3 + $0x4] sm:$0xf] %vm98, %v95
  // Predicated region
  $region14: #{_lambda_.14} parent=0 // pred_check
    _
  $region15: #{_lambda_.14} parent=0 // pred_check_branch
    %102 = sbr.rel (0) target = $region17
  $region16: #{_lambda_.14} parent=0 // pred_region
    _
  $region17: #{_lambda_.14} parent=0 // pred_fallthru
    _
  // Predicated region
  $region18: #{_lambda_.14} parent=0 // pred_check
    _
  $region19: #{_lambda_.14} parent=0 // pred_check_branch
    %104 = sbr.rel (0) target = $region21
  $region20: #{_lambda_.14} parent=0 // pred_region
    _
  $region21: #{_lambda_.14} parent=0 // pred_fallthru
    _

// kernel: _lambda_.13
$region0: #{_lambda_.13}
  #allocation0 [shape = 'u32[]', space=smem, size = 0x4, offset = 0x4, fixed_abs, tag = 'smem constant byte address 0x4 - core index']
  #allocation1 [shape = 'u32[144,128]{1,0:T(1,128)}', space=vmem, size = 0x12000, scoped, tag = 'internal scratch']
  %s0 = inlined_call_operand.vmem [shape: bf16[2,8,32], index: 0, kind: input, shape index: {}]
  %s1 = inlined_call_operand.vmem [shape: bf16[2,8,32], index: 1, kind: input, shape index: {}]
  %s2 = inlined_call_operand.vmem [shape: bf16[8,32], index: 2, kind: input, shape index: {}]
  %s3 = inlined_call_operand.vmem [shape: f32[1,32], index: 3, kind: input, shape index: {}]
  %s4 = inlined_call_operand.vmem [shape: f32[1,32], index: 4, kind: input, shape index: {}]
  %s5 = inlined_call_operand.vmem [shape: bf16[2,8,32], index: 5, kind: output, shape index: {}]
  %s6 = sld [smem:[#allocation0]]
  $region53: #{_lambda_.13} parent=0
    _
  %s8 = ssub.s32 1, %s6
  %s9 = scalar_select 0, %s8, %s6
  loop: start=0, step=1, limit=4
  $region2: #{_lambda_.13} parent=0 // loop_pre_header
    _
  $region3: #{_lambda_.13} parent=0 // loop_header
    %s11 = sphi 0, %s15
    %p12 = scmp.ge.s32.totalorder %s11, 4
    %s21 = sphi 0, %s23
    %s24 = sphi 0, %s21
    %s25 = sphi 0, %s24
    %s41 = sphi 0, %s25
    %s47 = sphi 0, %s49
    %s50 = sphi 0, %s47
    %s51 = sphi 0, %s50
    %s67 = sphi 0, %s51
    %s71 = sphi 0, %s71
    %s73 = sphi 0, %s71
    %s74 = sphi 0, %s73
    %s88 = sphi 0, %s74
    %s92 = sphi 0, %s92
    %s94 = sphi 0, %s92
    %s95 = sphi 0, %s94
    %s109 = sphi 0, %s95
    %s113 = sphi 0, %s113
    %s115 = sphi 0, %s113
    %s116 = sphi 0, %s115
    %s130 = sphi 0, %s116
    %s136 = sphi 0, %s138
    %s139 = sphi 0, %s136
    %s140 = sphi 0, %s139
    %s156 = sphi 0, %s140
  $region4: #{_lambda_.13} parent=0 // loop_header_branch
    %14 = sbr.rel (%p12) target = $region8
  $region5: #{_lambda_.13} parent=0 // loop_body
    %s16 = ssub.s32 %s11, 1
    %s17 = ssub.s32 %s11, 2
    %s18 = sadd.s32 %s11, 1
    %s19 = ssub.s32 %s11, %s18
    %p20 = scmp.eq.s32.totalorder %s19, 0
    %s22 = sadd.s32 %s21, 1
    %s23 = scalar_select %p20, %s21, %s22
    %p26 = pneg %p20
    %p27 = scmp.eq.s32.totalorder %s11, 1
    %p28 = por %p26, %p27
    %p29 = scmp.ne.s32.totalorder %s21, %s24
    %p30 = scmp.eq.s32.totalorder %s11, 0
    %p31 = por %p29, %p30
    %p32 = scmp.ne.s32.totalorder %s21, %s24
    %p33 = scmp.eq.s32.totalorder %s16, 1
    %p34 = por %p32, %p33
    %p35 = scmp.ne.s32.totalorder %s24, %s25
    %p36 = scmp.eq.s32.totalorder %s16, 0
    %p37 = por %p35, %p36
    %p38 = scmp.ne.s32.totalorder %s24, %s25
    %p39 = scmp.eq.s32.totalorder %s17, 1
    %p40 = por %p38, %p39
    %p42 = scmp.ne.s32.totalorder %s25, %s41
    %p43 = scmp.eq.s32.totalorder %s17, 0
    %p44 = por %p42, %p43
    %s45 = ssub.s32 %s11, %s18
    %p46 = scmp.eq.s32.totalorder %s45, 0
    %s48 = sadd.s32 %s47, 1
    %s49 = scalar_select %p46, %s47, %s48
    %p52 = pneg %p46
    %p53 = scmp.eq.s32.totalorder %s11, 1
    %p54 = por %p52, %p53
    %p55 = scmp.ne.s32.totalorder %s47, %s50
    %p56 = scmp.eq.s32.totalorder %s11, 0
    %p57 = por %p55, %p56
    %p58 = scmp.ne.s32.totalorder %s47, %s50
    %p59 = scmp.eq.s32.totalorder %s16, 1
    %p60 = por %p58, %p59
    %p61 = scmp.ne.s32.totalorder %s50, %s51
    %p62 = scmp.eq.s32.totalorder %s16, 0
    %p63 = por %p61, %p62
    %p64 = scmp.ne.s32.totalorder %s50, %s51
    %p65 = scmp.eq.s32.totalorder %s17, 1
    %p66 = por %p64, %p65
    %p68 = scmp.ne.s32.totalorder %s51, %s67
    %p69 = scmp.eq.s32.totalorder %s17, 0
    %p70 = por %p68, %p69
    %s72 = sadd.s32 %s71, 1
    %p75 = scmp.eq.s32.totalorder %s11, 1
    %p76 = scmp.ne.s32.totalorder %s71, %s73
    %p77 = scmp.eq.s32.totalorder %s11, 0
    %p78 = por %p76, %p77
    %p79 = scmp.ne.s32.totalorder %s71, %s73
    %p80 = scmp.eq.s32.totalorder %s16, 1
    %p81 = por %p79, %p80
    %p82 = scmp.ne.s32.totalorder %s73, %s74
    %p83 = scmp.eq.s32.totalorder %s16, 0
    %p84 = por %p82, %p83
    %p85 = scmp.ne.s32.totalorder %s73, %s74
    %p86 = scmp.eq.s32.totalorder %s17, 1
    %p87 = por %p85, %p86
    %p89 = scmp.ne.s32.totalorder %s74, %s88
    %p90 = scmp.eq.s32.totalorder %s17, 0
    %p91 = por %p89, %p90
    %s93 = sadd.s32 %s92, 1
    %p96 = scmp.eq.s32.totalorder %s11, 1
    %p97 = scmp.ne.s32.totalorder %s92, %s94
    %p98 = scmp.eq.s32.totalorder %s11, 0
    %p99 = por %p97, %p98
    %p100 = scmp.ne.s32.totalorder %s92, %s94
    %p101 = scmp.eq.s32.totalorder %s16, 1
    %p102 = por %p100, %p101
    %p103 = scmp.ne.s32.totalorder %s94, %s95
    %p104 = scmp.eq.s32.totalorder %s16, 0
    %p105 = por %p103, %p104
    %p106 = scmp.ne.s32.totalorder %s94, %s95
    %p107 = scmp.eq.s32.totalorder %s17, 1
    %p108 = por %p106, %p107
    %p110 = scmp.ne.s32.totalorder %s95, %s109
    %p111 = scmp.eq.s32.totalorder %s17, 0
    %p112 = por %p110, %p111
    %s114 = sadd.s32 %s113, 1
    %p117 = scmp.eq.s32.totalorder %s11, 1
    %p118 = scmp.ne.s32.totalorder %s113, %s115
    %p119 = scmp.eq.s32.totalorder %s11, 0
    %p120 = por %p118, %p119
    %p121 = scmp.ne.s32.totalorder %s113, %s115
    %p122 = scmp.eq.s32.totalorder %s16, 1
    %p123 = por %p121, %p122
    %p124 = scmp.ne.s32.totalorder %s115, %s116
    %p125 = scmp.eq.s32.totalorder %s16, 0
    %p126 = por %p124, %p125
    %p127 = scmp.ne.s32.totalorder %s115, %s116
    %p128 = scmp.eq.s32.totalorder %s17, 1
    %p129 = por %p127, %p128
    %p131 = scmp.ne.s32.totalorder %s116, %s130
    %p132 = scmp.eq.s32.totalorder %s17, 0
    %p133 = por %p131, %p132
    %s134 = ssub.s32 %s11, %s18
    %p135 = scmp.eq.s32.totalorder %s134, 0
    %s137 = sadd.s32 %s136, 1
    %s138 = scalar_select %p135, %s136, %s137
    %p141 = pneg %p135
    %p142 = scmp.eq.s32.totalorder %s11, 1
    %p143 = por %p141, %p142
    %p144 = scmp.ne.s32.totalorder %s136, %s139
    %p145 = scmp.eq.s32.totalorder %s11, 0
    %p146 = por %p144, %p145
    %p147 = scmp.ne.s32.totalorder %s136, %s139
    %p148 = scmp.eq.s32.totalorder %s16, 1
    %p149 = por %p147, %p148
    %p150 = scmp.ne.s32.totalorder %s139, %s140
    %p151 = scmp.eq.s32.totalorder %s16, 0
    %p152 = por %p150, %p151
    %p153 = scmp.ne.s32.totalorder %s139, %s140
    %p154 = scmp.eq.s32.totalorder %s17, 1
    %p155 = por %p153, %p154
    %p157 = scmp.ne.s32.totalorder %s140, %s156
    %p158 = scmp.eq.s32.totalorder %s17, 0
    %p159 = por %p157, %p158
    %p160 = scmp.le.s32.totalorder 1, %s11
    %p161 = scmp.lt.s32.totalorder %s11, 3
    %p162 = pnand %p160, %p161
    %p163 = pneg %p162
    // Predicated region
    $region9: #{_lambda_.13} parent=5 // pred_check
      _
    $region10: #{_lambda_.13} parent=5 // pred_check_branch
      %165 = sbr.rel (%p162) target = $region12
    $region11: #{_lambda_.13} parent=5 // pred_region
      %s166 = ssub.s32 %s11, 1
      // Predicated region
      $region13: #{_lambda_.13} parent=11 // pred_check
        %p167 = pneg %p84
      $region14: #{_lambda_.13} parent=11 // pred_check_branch
        %169 = sbr.rel (%p167) target = $region16
      $region15: #{_lambda_.13} parent=11 // pred_region
        _
      $region16: #{_lambda_.13} parent=11 // pred_fallthru
        _
      // Predicated region
      $region17: #{_lambda_.13} parent=11 // pred_check
        %p170 = pneg %p105
      $region18: #{_lambda_.13} parent=11 // pred_check_branch
        %172 = sbr.rel (%p170) target = $region20
      $region19: #{_lambda_.13} parent=11 // pred_region
        _
      $region20: #{_lambda_.13} parent=11 // pred_fallthru
        _
      // Predicated region
      $region21: #{_lambda_.13} parent=11 // pred_check
        %p173 = pneg %p126
      $region22: #{_lambda_.13} parent=11 // pred_check_branch
        %175 = sbr.rel (%p173) target = $region24
      $region23: #{_lambda_.13} parent=11 // pred_region
        _
      $region24: #{_lambda_.13} parent=11 // pred_fallthru
        _
    $region12: #{_lambda_.13} parent=5 // pred_fallthru
      _
    %p176 = scmp.lt.s32.totalorder %s11, 2
    // Predicated region
    $region25: #{_lambda_.13} parent=5 // pred_check
      %p177 = pneg %p176
    $region26: #{_lambda_.13} parent=5 // pred_check_branch
      %179 = sbr.rel (%p177) target = $region28
    $region27: #{_lambda_.13} parent=5 // pred_region
      // Predicated region
      $region29: #{_lambda_.13} parent=27 // pred_check
        %p180 = pneg %p31
      $region30: #{_lambda_.13} parent=27 // pred_check_branch
        %182 = sbr.rel (%p180) target = $region32
      $region31: #{_lambda_.13} parent=27 // pred_region
        %p183 = scmp.lt.s32.totalorder %s11, 1
        %s184 = scalar_select %p183, %s11, 1
        %s185 = smul.addr %s184, 4
        %s186 = scalar_lea.vmem %s0, %s185
      $region32: #{_lambda_.13} parent=27 // pred_fallthru
        _
      // Predicated region
      $region33: #{_lambda_.13} parent=27 // pred_check
        %p187 = pneg %p57
      $region34: #{_lambda_.13} parent=27 // pred_check_branch
        %189 = sbr.rel (%p187) target = $region36
      $region35: #{_lambda_.13} parent=27 // pred_region
        %p190 = scmp.lt.s32.totalorder %s11, 1
        %s191 = scalar_select %p190, %s11, 1
        %s192 = smul.addr %s191, 4
        %s193 = scalar_lea.vmem %s1, %s192
      $region36: #{_lambda_.13} parent=27 // pred_fallthru
        _
    $region28: #{_lambda_.13} parent=5 // pred_fallthru
      _
    %p194 = scmp.le.s32.totalorder 1, %s11
    %p195 = scmp.lt.s32.totalorder %s11, 3
    %p196 = pnand %p194, %p195
    %p197 = pneg %p196
    // Predicated region
    $region37: #{_lambda_.13} parent=5 // pred_check
      _
    $region38: #{_lambda_.13} parent=5 // pred_check_branch
      %199 = sbr.rel (%p196) target = $region40
    $region39: #{_lambda_.13} parent=5 // pred_region
      %s200 = ssub.s32 %s11, 1
      %p201 = scmp.lt.s32.totalorder %s16, 1
      %s202 = scalar_select %p201, %s16, 1
      %s203 = smul.addr %s202, 4
      %s204 = scalar_lea.vmem %s0, %s203
      %p205 = pneg %p37
      %p206 = pneg %p34
      %p207 = scmp.lt.s32.totalorder %s16, 1
      %s208 = scalar_select %p207, %s16, 1
      %s209 = smul.addr %s208, 4
      %s210 = scalar_lea.vmem %s1, %s209
      %p211 = pneg %p63
      %p212 = pneg %p60
      %p213 = pneg %p84
      %p214 = pneg %p81
      %p215 = pneg %p105
      %p216 = pneg %p102
      %p217 = pneg %p126
      %p218 = pneg %p123
      %p219 = pneg %p152
      %p220 = pneg %p149
      %p221 = scmp.lt.s32.totalorder %s16, 1
      %s222 = scalar_select %p221, %s16, 1
      %s223 = smul.addr %s222, 4
      %s224 = scalar_lea.vmem %s5, %s223
      %p225 = scmp.lt.s32.totalorder %s16, 1
      %s226 = scalar_select %p225, %s16, 1
      %s227 = smul.addr %s226, 4
      %s228 = scalar_lea.vmem %s0, %s227
      %p229 = scmp.lt.s32.totalorder %s16, 1
      %s230 = scalar_select %p229, %s16, 1
      %s231 = smul.addr %s230, 4
      %s232 = scalar_lea.vmem %s1, %s231
      %p233 = scmp.lt.s32.totalorder %s16, 1
      %s234 = scalar_select %p233, %s16, 1
      %s235 = smul.addr %s234, 4
      %s236 = scalar_lea.vmem %s5, %s235
      %v237 = vld [vmem:[%s228] sm:$0xf]
      %v238 = vunpack.c.l.bf16 %v237
      %v239 = vld [vmem:[%s232] sm:$0xf]
      %v240 = vunpack.c.l.bf16 %v239
      %v241 = vadd.f32 %v238, %v240
      %v242 = vld [vmem:[%s2] sm:$0xf]
      %v243 = vunpack.c.l.bf16 %v242
      %v244 = vadd.f32 %v241, %v243
      %vm245 = vcmask 261120
      %v246 = vsel %vm245, %v244, 0.0
      %247 = vadd.xlane.f32.xlu0 %v246
      %v248 = vpop.xlane.xlu0 %247
      %v249 = vrcp.pop 32.0
      %v250 = vmul.f32 %v248, %v249
      %v251 = vsub.f32 %v244, %v250
      %v252 = vmul.f32 %v251, %v251
      %v253 = vsel %vm245, %v252, 0.0
      %254 = vadd.xlane.f32.xlu0 %v253
      %v255 = vpop.xlane.xlu0 %254
      %v256 = vmul.f32 %v255, %v249
      %v257 = vadd.f32 %v256, 1e-12
      %v258 = vrsqrt.pop %v257
      %v259 = vmul.f32 %v251, %v258
      %v260 = vld [vmem:[%s3] sm:$0x1]
      %v262 = vlaneseq
      %v263 = vshrl.u32 %v262, 7
      %v264 = vsub.s32 0, %v263
      %v265 = vrot.slane %v260, %v264
      %v267 = vmul.f32 %v259, %v265
      %v268 = vld [vmem:[%s4] sm:$0x1]
      %v270 = vlaneseq
      %v271 = vshrl.u32 %v270, 7
      %v272 = vsub.s32 0, %v271
      %v273 = vrot.slane %v268, %v272
      %v275 = vadd.f32 %v267, %v273
      %v276 = vpack.c.bf16 %v275, %v275
      %vm277 = vcmask 257024
      %278 = vst.msk [vmem:[%s236] sm:$0xf] %vm277, %v276
      %p279 = scmp.lt.s32.totalorder %s16, 1
      %s280 = scalar_select %p279, %s16, 1
      %s281 = smul.addr %s280, 4
      %s282 = scalar_lea.vmem %s5, %s281
      // Predicated region
      $region41: #{_lambda_.13} parent=39 // pred_check
        %p283 = pneg %p149
      $region42: #{_lambda_.13} parent=39 // pred_check_branch
        %285 = sbr.rel (%p283) target = $region44
      $region43: #{_lambda_.13} parent=39 // pred_region
        _
      $region44: #{_lambda_.13} parent=39 // pred_fallthru
        _
    $region40: #{_lambda_.13} parent=5 // pred_fallthru
      _
    %p286 = scmp.le.s32.totalorder 2, %s11
    // Predicated region
    $region45: #{_lambda_.13} parent=5 // pred_check
      %p287 = pneg %p286
    $region46: #{_lambda_.13} parent=5 // pred_check_branch
      %289 = sbr.rel (%p287) target = $region48
    $region47: #{_lambda_.13} parent=5 // pred_region
      %s290 = ssub.s32 %s11, 2
      // Predicated region
      $region49: #{_lambda_.13} parent=47 // pred_check
        %p291 = pneg %p155
      $region50: #{_lambda_.13} parent=47 // pred_check_branch
        %293 = sbr.rel (%p291) target = $region52
      $region51: #{_lambda_.13} parent=47 // pred_region
        %p294 = scmp.lt.s32.totalorder %s17, 1
        %s295 = scalar_select %p294, %s17, 1
        %s296 = smul.addr %s295, 4
        %s297 = scalar_lea.vmem %s5, %s296
      $region52: #{_lambda_.13} parent=47 // pred_fallthru
        _
    $region48: #{_lambda_.13} parent=5 // pred_fallthru
      _
  $region6: #{_lambda_.13} parent=0 // loop_footer
    %s15 = sadd.s32 1, %s11
  $region7: #{_lambda_.13} parent=0 // loop_footer_branch
    %10 = sbr.rel target = $region3
  $region8: #{_lambda_.13} parent=0 // loop_exit
    _

// kernel: _lambda_.16
$region0: #{_lambda_.16}
  #allocation0 [shape = 'u32[]', space=smem, size = 0x4, offset = 0x4, fixed_abs, tag = 'smem constant byte address 0x4 - core index']
  #allocation1 [shape = 'u32[144,128]{1,0:T(1,128)}', space=vmem, size = 0x12000, scoped, tag = 'internal scratch']
  %s0 = inlined_call_operand.vmem [shape: bf16[16,32], index: 0, kind: input, shape index: {}]
  %s1 = inlined_call_operand.vmem [shape: bf16[32,32], index: 1, kind: input, shape index: {}]
  %s2 = inlined_call_operand.vmem [shape: f32[1,32], index: 2, kind: input, shape index: {}]
  %s3 = inlined_call_operand.vmem [shape: bf16[16,32], index: 3, kind: input, shape index: {}]
  %s4 = inlined_call_operand.vmem [shape: f32[1,32], index: 4, kind: input, shape index: {}]
  %s5 = inlined_call_operand.vmem [shape: f32[1,32], index: 5, kind: input, shape index: {}]
  %s6 = inlined_call_operand.vmem [shape: bf16[16,32], index: 6, kind: output, shape index: {}]
  %s7 = sld [smem:[#allocation0]]
  $region34: #{_lambda_.16} parent=0
    _
  %s9 = ssub.s32 1, %s7
  %s10 = scalar_select 0, %s9, %s7
  // Predicated region
  $region2: #{_lambda_.16} parent=0 // pred_check
    _
  $region3: #{_lambda_.16} parent=0 // pred_check_branch
    %12 = sbr.rel (0) target = $region5
  $region4: #{_lambda_.16} parent=0 // pred_region
    _
  $region5: #{_lambda_.16} parent=0 // pred_fallthru
    _
  // Predicated region
  $region6: #{_lambda_.16} parent=0 // pred_check
    _
  $region7: #{_lambda_.16} parent=0 // pred_check_branch
    %14 = sbr.rel (0) target = $region9
  $region8: #{_lambda_.16} parent=0 // pred_region
    _
  $region9: #{_lambda_.16} parent=0 // pred_fallthru
    _
  // Predicated region
  $region10: #{_lambda_.16} parent=0 // pred_check
    _
  $region11: #{_lambda_.16} parent=0 // pred_check_branch
    %16 = sbr.rel (0) target = $region13
  $region12: #{_lambda_.16} parent=0 // pred_region
    _
  $region13: #{_lambda_.16} parent=0 // pred_fallthru
    _
  // Predicated region
  $region14: #{_lambda_.16} parent=0 // pred_check
    _
  $region15: #{_lambda_.16} parent=0 // pred_check_branch
    %18 = sbr.rel (0) target = $region17
  $region16: #{_lambda_.16} parent=0 // pred_region
    _
  $region17: #{_lambda_.16} parent=0 // pred_fallthru
    _
  // Predicated region
  $region18: #{_lambda_.16} parent=0 // pred_check
    _
  $region19: #{_lambda_.16} parent=0 // pred_check_branch
    %20 = sbr.rel (0) target = $region21
  $region20: #{_lambda_.16} parent=0 // pred_region
    _
  $region21: #{_lambda_.16} parent=0 // pred_fallthru
    _
  // Predicated region
  $region22: #{_lambda_.16} parent=0 // pred_check
    _
  $region23: #{_lambda_.16} parent=0 // pred_check_branch
    %22 = sbr.rel (0) target = $region25
  $region24: #{_lambda_.16} parent=0 // pred_region
    _
  $region25: #{_lambda_.16} parent=0 // pred_fallthru
    _
  %v24 = vld [vmem:[%s0] sm:$0xf]
  %v25 = vld [vmem:[%s0 + $0x4] sm:$0xf]
  %v26 = vld [vmem:[%s1] sm:$0xf]
  %v27 = vld [vmem:[%s1 + $0x4] sm:$0xf]
  %v28 = vld [vmem:[%s1 + $0x8] sm:$0xf]
  %v29 = vld [vmem:[%s1 + $0xc] sm:$0xf]
  %v30 = vld [vmem:[%s2] sm:$0x1]
  %v32 = vlaneseq
  %v33 = vshrl.u32 %v32, 7
  %v34 = vsub.s32 0, %v33
  %v35 = vrot.slane %v30, %v34
  %v39 = vunpack.c.l.b16 %v24
  %v40 = vunpack.c.l.b16 %v25
  %v41 = vpack.c.b16 %v40, %v39
  %v46 = vunpack.c.l.b16 %v26
  %v47 = vunpack.c.l.b16 %v27
  %v48 = vunpack.c.l.b16 %v28
  %v49 = vunpack.c.l.b16 %v29
  %v50 = vpack.c.b16 %v47, %v46
  %v51 = vpack.c.b16 %v49, %v48
  %vm54 = vcmask 261120
  %v56 = vsel %vm54, %v41, 0
  %58 = vmatprep.subr.bf16.mxu0 0
  %59 = vmatpush1.bf16.msra.mxu0 %v50
  %60 = vmatprep.subr.bf16.mxu0 0
  %61 = vmatpush1.bf16.msra.mxu0 %v51
  %62 = vmatprep.subr.bf16.mxu0 0
  %63 = vmatpush1.bf16.msra.mxu0 0
  %64 = vmatprep.subr.bf16.mxu0 0
  %65 = vmatpush1.bf16.msra.mxu0 0
  %66 = vmatprep.subr.bf16.mxu0 0
  %67 = vmatpush1.bf16.msra.mxu0 0
  %68 = vmatprep.subr.bf16.mxu0 0
  %69 = vmatpush1.bf16.msra.mxu0 0
  %70 = vmatprep.subr.bf16.mxu0 0
  %71 = vmatpush1.bf16.msra.mxu0 0
  %72 = vmatprep.subr.bf16.mxu0 0
  %73 = vmatpush1.bf16.msra.mxu0 0
  %74 = vmatprep.subr.bf16.mxu0 0
  %75 = vmatpush1.bf16.msra.mxu0 0
  %76 = vmatprep.subr.bf16.mxu0 0
  %77 = vmatpush1.bf16.msra.mxu0 0
  %78 = vmatprep.subr.bf16.mxu0 0
  %79 = vmatpush1.bf16.msra.mxu0 0
  %80 = vmatprep.subr.bf16.mxu0 0
  %81 = vmatpush1.bf16.msra.mxu0 0
  %82 = vmatprep.subr.bf16.mxu0 0
  %83 = vmatpush1.bf16.msra.mxu0 0
  %84 = vmatprep.subr.bf16.mxu0 0
  %85 = vmatpush1.bf16.msra.mxu0 0
  %86 = vmatprep.subr.bf16.mxu0 0
  %87 = vmatpush1.bf16.msra.mxu0 0
  %88 = vmatprep.subr.bf16.mxu0 0
  %89 = vmatpush1.bf16.msra.mxu0 0
  %90 = vmatprep.mubr.bf16.mxu0 0
  %91 = vmatmul.mubr.bf16.gmra.mrb[0].mxu0 %v56
  %v92 = vpop.f32.mrb[0].mxu0
  %v93 = vadd.f32 %v35, %v92
  %v94 = vpop.f32.mrb[0].mxu0
  %v95 = vpop.f32.mrb[0].mxu0
  %v96 = vadd.f32 %v35, %v95
  %v97 = vpop.f32.mrb[0].mxu0
  %98 = vdwg.mxu0
  %v99 = vld [vmem:[%s3] sm:$0xf]
  %v100 = vld [vmem:[%s3 + $0x4] sm:$0xf]
  %v101 = vunpack.c.l.bf16 %v99
  %v102 = vunpack.c.l.bf16 %v100
  %v103 = vadd.f32 %v93, %v101
  %v104 = vadd.f32 %v96, %v102
  %v105 = vsel %vm54, %v103, 0.0
  %106 = vadd.xlane.f32.xlu0 %v105
  %v107 = vpop.xlane.xlu0 %106
  %v108 = vsel %vm54, %v104, 0.0
  %109 = vadd.xlane.f32.xlu0 %v108
  %v110 = vpop.xlane.xlu0 %109
  %v111 = vrcp.pop 32.0
  %v112 = vmul.f32 %v107, %v111
  %v113 = vmul.f32 %v110, %v111
  %v114 = vsub.f32 %v103, %v112
  %v115 = vsub.f32 %v104, %v113
  %v116 = vmul.f32 %v114, %v114
  %v117 = vmul.f32 %v115, %v115
  %v118 = vsel %vm54, %v116, 0.0
  %119 = vadd.xlane.f32.xlu0 %v118
  %v120 = vpop.xlane.xlu0 %119
  %v121 = vsel %vm54, %v117, 0.0
  %122 = vadd.xlane.f32.xlu0 %v121
  %v123 = vpop.xlane.xlu0 %122
  %v124 = vmul.f32 %v120, %v111
  %v125 = vmul.f32 %v123, %v111
  %v126 = vadd.f32 %v124, 1e-12
  %v127 = vadd.f32 %v125, 1e-12
  %v128 = vrsqrt.pop %v126
  %v129 = vrsqrt.pop %v127
  %v130 = vmul.f32 %v114, %v128
  %v131 = vmul.f32 %v115, %v129
  %v132 = vld [vmem:[%s4] sm:$0x1]
  %v134 = vlaneseq
  %v135 = vshrl.u32 %v134, 7
  %v136 = vsub.s32 0, %v135
  %v137 = vrot.slane %v132, %v136
  %v139 = vmul.f32 %v130, %v137
  %v140 = vmul.f32 %v131, %v137
  %v141 = vld [vmem:[%s5] sm:$0x1]
  %v143 = vlaneseq
  %v144 = vshrl.u32 %v143, 7
  %v145 = vsub.s32 0, %v144
  %v146 = vrot.slane %v141, %v145
  %v148 = vadd.f32 %v139, %v146
  %v149 = vadd.f32 %v140, %v146
  %v150 = vpack.c.bf16 %v149, %v148
  %v152 = vunpack.c.l.b16 %v150
  %v153 = vunpack.c.h.b16 %v150
  %v154 = vpack.c.b16 %v152, %v152
  %v155 = vpack.c.b16 %v153, %v153
  %vm158 = vcmask 257024
  %159 = vst.msk [vmem:[%s6] sm:$0xf] %vm158, %v154
  %160 = vst.msk [vmem:[%s6 + $0x4] sm:$0xf] %vm158, %v155
  // Predicated region
  $region26: #{_lambda_.16} parent=0 // pred_check
    _
  $region27: #{_lambda_.16} parent=0 // pred_check_branch
    %162 = sbr.rel (0) target = $region29
  $region28: #{_lambda_.16} parent=0 // pred_region
    _
  $region29: #{_lambda_.16} parent=0 // pred_fallthru
    _
  // Predicated region
  $region30: #{_lambda_.16} parent=0 // pred_check
    _
  $region31: #{_lambda_.16} parent=0 // pred_check_branch
    %164 = sbr.rel (0) target = $region33
  $region32: #{_lambda_.16} parent=0 // pred_region
    _
  $region33: #{_lambda_.16} parent=0 // pred_fallthru
    _

// kernel: _lambda_.15
$region0: #{_lambda_.15}
  #allocation0 [shape = 'u32[]', space=smem, size = 0x4, offset = 0x4, fixed_abs, tag = 'smem constant byte address 0x4 - core index']
  #allocation1 [shape = 'u32[144,128]{1,0:T(1,128)}', space=vmem, size = 0x12000, scoped, tag = 'internal scratch']
  %s0 = inlined_call_operand.vmem [shape: bf16[2,8,96], index: 0, kind: input, shape index: {}]
  %s1 = inlined_call_operand.vmem [shape: f32[2,1,8], index: 1, kind: input, shape index: {}]
  %s2 = inlined_call_operand.vmem [shape: bf16[2,8,32], index: 2, kind: output, shape index: {}]
  %s3 = sld [smem:[#allocation0]]
  $region41: #{_lambda_.15} parent=0
    _
  %s5 = ssub.s32 1, %s3
  %s6 = scalar_select 0, %s5, %s3
  loop: start=0, step=1, limit=4
  $region2: #{_lambda_.15} parent=0 // loop_pre_header
    _
  $region3: #{_lambda_.15} parent=0 // loop_header
    %s8 = sphi 0, %s12
    %p9 = scmp.ge.s32.totalorder %s8, 4
    %s18 = sphi 0, %s20
    %s21 = sphi 0, %s18
    %s22 = sphi 0, %s21
    %s38 = sphi 0, %s22
    %s44 = sphi 0, %s46
    %s47 = sphi 0, %s44
    %s48 = sphi 0, %s47
    %s64 = sphi 0, %s48
    %s70 = sphi 0, %s72
    %s73 = sphi 0, %s70
    %s74 = sphi 0, %s73
    %s90 = sphi 0, %s74
  $region4: #{_lambda_.15} parent=0 // loop_header_branch
    %11 = sbr.rel (%p9) target = $region8
  $region5: #{_lambda_.15} parent=0 // loop_body
    %s13 = ssub.s32 %s8, 1
    %s14 = ssub.s32 %s8, 2
    %s15 = sadd.s32 %s8, 1
    %s16 = ssub.s32 %s8, %s15
    %p17 = scmp.eq.s32.totalorder %s16, 0
    %s19 = sadd.s32 %s18, 1
    %s20 = scalar_select %p17, %s18, %s19
    %p23 = pneg %p17
    %p24 = scmp.eq.s32.totalorder %s8, 1
    %p25 = por %p23, %p24
    %p26 = scmp.ne.s32.totalorder %s18, %s21
    %p27 = scmp.eq.s32.totalorder %s8, 0
    %p28 = por %p26, %p27
    %p29 = scmp.ne.s32.totalorder %s18, %s21
    %p30 = scmp.eq.s32.totalorder %s13, 1
    %p31 = por %p29, %p30
    %p32 = scmp.ne.s32.totalorder %s21, %s22
    %p33 = scmp.eq.s32.totalorder %s13, 0
    %p34 = por %p32, %p33
    %p35 = scmp.ne.s32.totalorder %s21, %s22
    %p36 = scmp.eq.s32.totalorder %s14, 1
    %p37 = por %p35, %p36
    %p39 = scmp.ne.s32.totalorder %s22, %s38
    %p40 = scmp.eq.s32.totalorder %s14, 0
    %p41 = por %p39, %p40
    %s42 = ssub.s32 %s8, %s15
    %p43 = scmp.eq.s32.totalorder %s42, 0
    %s45 = sadd.s32 %s44, 1
    %s46 = scalar_select %p43, %s44, %s45
    %p49 = pneg %p43
    %p50 = scmp.eq.s32.totalorder %s8, 1
    %p51 = por %p49, %p50
    %p52 = scmp.ne.s32.totalorder %s44, %s47
    %p53 = scmp.eq.s32.totalorder %s8, 0
    %p54 = por %p52, %p53
    %p55 = scmp.ne.s32.totalorder %s44, %s47
    %p56 = scmp.eq.s32.totalorder %s13, 1
    %p57 = por %p55, %p56
    %p58 = scmp.ne.s32.totalorder %s47, %s48
    %p59 = scmp.eq.s32.totalorder %s13, 0
    %p60 = por %p58, %p59
    %p61 = scmp.ne.s32.totalorder %s47, %s48
    %p62 = scmp.eq.s32.totalorder %s14, 1
    %p63 = por %p61, %p62
    %p65 = scmp.ne.s32.totalorder %s48, %s64
    %p66 = scmp.eq.s32.totalorder %s14, 0
    %p67 = por %p65, %p66
    %s68 = ssub.s32 %s8, %s15
    %p69 = scmp.eq.s32.totalorder %s68, 0
    %s71 = sadd.s32 %s70, 1
    %s72 = scalar_select %p69, %s70, %s71
    %p75 = pneg %p69
    %p76 = scmp.eq.s32.totalorder %s8, 1
    %p77 = por %p75, %p76
    %p78 = scmp.ne.s32.totalorder %s70, %s73
    %p79 = scmp.eq.s32.totalorder %s8, 0
    %p80 = por %p78, %p79
    %p81 = scmp.ne.s32.totalorder %s70, %s73
    %p82 = scmp.eq.s32.totalorder %s13, 1
    %p83 = por %p81, %p82
    %p84 = scmp.ne.s32.totalorder %s73, %s74
    %p85 = scmp.eq.s32.totalorder %s13, 0
    %p86 = por %p84, %p85
    %p87 = scmp.ne.s32.totalorder %s73, %s74
    %p88 = scmp.eq.s32.totalorder %s14, 1
    %p89 = por %p87, %p88
    %p91 = scmp.ne.s32.totalorder %s74, %s90
    %p92 = scmp.eq.s32.totalorder %s14, 0
    %p93 = por %p91, %p92
    %p94 = scmp.le.s32.totalorder 1, %s8
    %p95 = scmp.lt.s32.totalorder %s8, 3
    %p96 = pnand %p94, %p95
    %p97 = pneg %p96
    // Predicated region
    $region9: #{_lambda_.15} parent=5 // pred_check
      _
    $region10: #{_lambda_.15} parent=5 // pred_check_branch
      %99 = sbr.rel (%p96) target = $region12
    $region11: #{_lambda_.15} parent=5 // pred_region
      %s100 = ssub.s32 %s8, 1
    $region12: #{_lambda_.15} parent=5 // pred_fallthru
      _
    %p101 = scmp.lt.s32.totalorder %s8, 2
    // Predicated region
    $region13: #{_lambda_.15} parent=5 // pred_check
      %p102 = pneg %p101
    $region14: #{_lambda_.15} parent=5 // pred_check_branch
      %104 = sbr.rel (%p102) target = $region16
    $region15: #{_lambda_.15} parent=5 // pred_region
      // Predicated region
      $region17: #{_lambda_.15} parent=15 // pred_check
        %p105 = pneg %p28
      $region18: #{_lambda_.15} parent=15 // pred_check_branch
        %107 = sbr.rel (%p105) target = $region20
      $region19: #{_lambda_.15} parent=15 // pred_region
        %p108 = scmp.lt.s32.totalorder %s8, 1
        %s109 = scalar_select %p108, %s8, 1
        %s110 = smul.addr %s109, 4
        %s111 = scalar_lea.vmem %s0, %s110
      $region20: #{_lambda_.15} parent=15 // pred_fallthru
        _
      // Predicated region
      $region21: #{_lambda_.15} parent=15 // pred_check
        %p112 = pneg %p54
      $region22: #{_lambda_.15} parent=15 // pred_check_branch
        %114 = sbr.rel (%p112) target = $region24
      $region23: #{_lambda_.15} parent=15 // pred_region
        %p115 = scmp.lt.s32.totalorder %s8, 1
        %s116 = scalar_select %p115, %s8, 1
        %s117 = scalar_lea.vmem %s1, %s116
      $region24: #{_lambda_.15} parent=15 // pred_fallthru
        _
    $region16: #{_lambda_.15} parent=5 // pred_fallthru
      _
    %p118 = scmp.le.s32.totalorder 1, %s8
    %p119 = scmp.lt.s32.totalorder %s8, 3
    %p120 = pnand %p118, %p119
    %p121 = pneg %p120
    // Predicated region
    $region25: #{_lambda_.15} parent=5 // pred_check
      _
    $region26: #{_lambda_.15} parent=5 // pred_check_branch
      %123 = sbr.rel (%p120) target = $region28
    $region27: #{_lambda_.15} parent=5 // pred_region
      %s124 = ssub.s32 %s8, 1
      %p125 = scmp.lt.s32.totalorder %s13, 1
      %s126 = scalar_select %p125, %s13, 1
      %s127 = smul.addr %s126, 4
      %s128 = scalar_lea.vmem %s0, %s127
      %p129 = pneg %p34
      %p130 = pneg %p31
      %p131 = scmp.lt.s32.totalorder %s13, 1
      %s132 = scalar_select %p131, %s13, 1
      %s133 = scalar_lea.vmem %s1, %s132
      %p134 = pneg %p60
      %p135 = pneg %p57
      %p136 = pneg %p86
      %p137 = pneg %p83
      %p138 = scmp.lt.s32.totalorder %s13, 1
      %s139 = scalar_select %p138, %s13, 1
      %s140 = smul.addr %s139, 4
      %s141 = scalar_lea.vmem %s2, %s140
      %p142 = scmp.lt.s32.totalorder %s13, 1
      %s143 = scalar_select %p142, %s13, 1
      %s144 = smul.addr %s143, 4
      %s145 = scalar_lea.vmem %s0, %s144
      %p146 = scmp.lt.s32.totalorder %s13, 1
      %s147 = scalar_select %p146, %s13, 1
      %s148 = scalar_lea.vmem %s1, %s147
      %p149 = scmp.lt.s32.totalorder %s13, 1
      %s150 = scalar_select %p149, %s13, 1
      %s151 = smul.addr %s150, 4
      %s152 = scalar_lea.vmem %s2, %s151
      %v154 = vld [vmem:[%s148] sm:$0x1]
      %v155 = vld [vmem:[%s145] sm:$0xf]
      %v157 = vunpack.c.l.b16 %v155
      %v158 = vpack.c.b16 %v157, %v157
      %159 = vrot.lane.b32.xlu0 %v158, 96
      %v160 = vpop.permute.xlu0 %159
      %vm161 = vcmask 64512
      %v163 = vsel %vm161, %v155, 0
      %v166 = vsel %vm161, %v160, 0
      %168 = vmatprep.subr.bf16.mxu0 0
      %169 = vmatpush1.bf16.xpose.msra.mxu0 %v166
      %170 = vmatprep.subr.bf16.mxu0 0
      %171 = vmatpush1.bf16.xpose.msra.mxu0 0
      %172 = vmatprep.subr.bf16.mxu0 0
      %173 = vmatpush1.bf16.xpose.msra.mxu0 0
      %174 = vmatprep.subr.bf16.mxu0 0
      %175 = vmatpush1.bf16.xpose.msra.mxu0 0
      %176 = vmatprep.subr.bf16.mxu0 0
      %177 = vmatpush1.bf16.xpose.msra.mxu0 0
      %178 = vmatprep.subr.bf16.mxu0 0
      %179 = vmatpush1.bf16.xpose.msra.mxu0 0
      %180 = vmatprep.subr.bf16.mxu0 0
      %181 = vmatpush1.bf16.xpose.msra.mxu0 0
      %182 = vmatprep.subr.bf16.mxu0 0
      %183 = vmatpush1.bf16.xpose.msra.mxu0 0
      %184 = vmatprep.subr.bf16.mxu0 0
      %185 = vmatpush1.bf16.xpose.msra.mxu0 0
      %186 = vmatprep.subr.bf16.mxu0 0
      %187 = vmatpush1.bf16.xpose.msra.mxu0 0
      %188 = vmatprep.subr.bf16.mxu0 0
      %189 = vmatpush1.bf16.xpose.msra.mxu0 0
      %190 = vmatprep.subr.bf16.mxu0 0
      %191 = vmatpush1.bf16.xpose.msra.mxu0 0
      %192 = vmatprep.subr.bf16.mxu0 0
      %193 = vmatpush1.bf16.xpose.msra.mxu0 0
      %194 = vmatprep.subr.bf16.mxu0 0
      %195 = vmatpush1.bf16.xpose.msra.mxu0 0
      %196 = vmatprep.subr.bf16.mxu0 0
      %197 = vmatpush1.bf16.xpose.msra.mxu0 0
      %198 = vmatprep.subr.bf16.mxu0 0
      %199 = vmatpush1.bf16.xpose.msra.mxu0 0
      %200 = vmatprep.mubr.bf16.mxu0 0
      %201 = vmatmul.mubr.bf16.gmra.mrb[0].mxu0 %v163
      %v202 = vpop.f32.mrb[0].mxu0
      %v203 = vadd.f32 0.0, %v202
      %v204 = vpop.f32.mrb[0].mxu0
      %v205 = vpop.f32.mrb[0].mxu0
      %v206 = vpop.f32.mrb[0].mxu0
      %207 = vdwg.mxu0
      %v208 = vmul.f32 %v203, 0.35355338
      %v210 = vlaneseq
      %v211 = vshrl.u32 %v210, 7
      %v212 = vsub.s32 0, %v211
      %v213 = vrot.slane %v154, %v212
      %v215 = vadd.f32 %v208, %v213
      %v216 = vsel %vm161, %v215, -inf
      %217 = vmax.xlane.f32.xlu0 %v216
      %v218 = vpop.xlane.xlu0 %217
      %v219 = vsub.f32 %v215, %v218
      %v220 = vmul.f32 %v219, 1.442695
      %v221 = vpow.pop %v220
      %v222 = vsel %vm161, %v221, 0.0
      %223 = vadd.xlane.f32.xlu0 %v222
      %v224 = vpop.xlane.xlu0 %223
      %v225 = vrcp.pop %v224
      %v226 = vmul.f32 %v221, %v225
      %v227 = vpack.c.bf16 %v226, %v226
      %228 = vrot.lane.b32.xlu0 %v158, 64
      %v229 = vpop.permute.xlu0 %228
      %v231 = vsel %vm161, %v227, 0
      %vm233 = vcmask 1043456
      %v235 = vsel %vm233, %v229, 0
      %237 = vmatprep.subr.bf16.mxu0 0
      %238 = vmatpush1.bf16.msra.mxu0 %v235
      %239 = vmatprep.subr.bf16.mxu0 0
      %240 = vmatpush1.bf16.msra.mxu0 0
      %241 = vmatprep.subr.bf16.mxu0 0
      %242 = vmatpush1.bf16.msra.mxu0 0
      %243 = vmatprep.subr.bf16.mxu0 0
      %244 = vmatpush1.bf16.msra.mxu0 0
      %245 = vmatprep.subr.bf16.mxu0 0
      %246 = vmatpush1.bf16.msra.mxu0 0
      %247 = vmatprep.subr.bf16.mxu0 0
      %248 = vmatpush1.bf16.msra.mxu0 0
      %249 = vmatprep.subr.bf16.mxu0 0
      %250 = vmatpush1.bf16.msra.mxu0 0
      %251 = vmatprep.subr.bf16.mxu0 0
      %252 = vmatpush1.bf16.msra.mxu0 0
      %253 = vmatprep.subr.bf16.mxu0 0
      %254 = vmatpush1.bf16.msra.mxu0 0
      %255 = vmatprep.subr.bf16.mxu0 0
      %256 = vmatpush1.bf16.msra.mxu0 0
      %257 = vmatprep.subr.bf16.mxu0 0
      %258 = vmatpush1.bf16.msra.mxu0 0
      %259 = vmatprep.subr.bf16.mxu0 0
      %260 = vmatpush1.bf16.msra.mxu0 0
      %261 = vmatprep.subr.bf16.mxu0 0
      %262 = vmatpush1.bf16.msra.mxu0 0
      %263 = vmatprep.subr.bf16.mxu0 0
      %264 = vmatpush1.bf16.msra.mxu0 0
      %265 = vmatprep.subr.bf16.mxu0 0
      %266 = vmatpush1.bf16.msra.mxu0 0
      %267 = vmatprep.subr.bf16.mxu0 0
      %268 = vmatpush1.bf16.msra.mxu0 0
      %269 = vmatprep.mubr.bf16.mxu0 0
      %270 = vmatmul.mubr.bf16.gmra.mrb[0].mxu0 %v231
      %v271 = vpop.f32.mrb[0].mxu0
      %v272 = vadd.f32 0.0, %v271
      %v273 = vpop.f32.mrb[0].mxu0
      %v274 = vpop.f32.mrb[0].mxu0
      %v275 = vpop.f32.mrb[0].mxu0
      %276 = vdwg.mxu0
      %277 = vrot.lane.b32.xlu0 %v158, 120
      %v278 = vpop.permute.xlu0 %277
      %279 = vrot.lane.b32.xlu0 %v158, 88
      %v280 = vpop.permute.xlu0 %279
      %v282 = vsel %vm161, %v278, 0
      %v285 = vsel %vm161, %v280, 0
      %287 = vmatprep.subr.bf16.mxu0 0
      %288 = vmatpush1.bf16.xpose.msra.mxu0 %v285
      %289 = vmatprep.subr.bf16.mxu0 0
      %290 = vmatpush1.bf16.xpose.msra.mxu0 0
      %291 = vmatprep.subr.bf16.mxu0 0
      %292 = vmatpush1.bf16.xpose.msra.mxu0 0
      %293 = vmatprep.subr.bf16.mxu0 0
      %294 = vmatpush1.bf16.xpose.msra.mxu0 0
      %295 = vmatprep.subr.bf16.mxu0 0
      %296 = vmatpush1.bf16.xpose.msra.mxu0 0
      %297 = vmatprep.subr.bf16.mxu0 0
      %298 = vmatpush1.bf16.xpose.msra.mxu0 0
      %299 = vmatprep.subr.bf16.mxu0 0
      %300 = vmatpush1.bf16.xpose.msra.mxu0 0
      %301 = vmatprep.subr.bf16.mxu0 0
      %302 = vmatpush1.bf16.xpose.msra.mxu0 0
      %303 = vmatprep.subr.bf16.mxu0 0
      %304 = vmatpush1.bf16.xpose.msra.mxu0 0
      %305 = vmatprep.subr.bf16.mxu0 0
      %306 = vmatpush1.bf16.xpose.msra.mxu0 0
      %307 = vmatprep.subr.bf16.mxu0 0
      %308 = vmatpush1.bf16.xpose.msra.mxu0 0
      %309 = vmatprep.subr.bf16.mxu0 0
      %310 = vmatpush1.bf16.xpose.msra.mxu0 0
      %311 = vmatprep.subr.bf16.mxu0 0
      %312 = vmatpush1.bf16.xpose.msra.mxu0 0
      %313 = vmatprep.subr.bf16.mxu0 0
      %314 = vmatpush1.bf16.xpose.msra.mxu0 0
      %315 = vmatprep.subr.bf16.mxu0 0
      %316 = vmatpush1.bf16.xpose.msra.mxu0 0
      %317 = vmatprep.subr.bf16.mxu0 0
      %318 = vmatpush1.bf16.xpose.msra.mxu0 0
      %319 = vmatprep.mubr.bf16.mxu0 0
      %320 = vmatmul.mubr.bf16.gmra.mrb[0].mxu0 %v282
      %v321 = vpop.f32.mrb[0].mxu0
      %v322 = vadd.f32 0.0, %v321
      %v323 = vpop.f32.mrb[0].mxu0
      %v324 = vpop.f32.mrb[0].mxu0
      %v325 = vpop.f32.mrb[0].mxu0
      %326 = vdwg.mxu0
      %v327 = vmul.f32 %v322, 0.35355338
      %v328 = vadd.f32 %v327, %v213
      %v329 = vsel %vm161, %v328, -inf
      %330 = vmax.xlane.f32.xlu0 %v329
      %v331 = vpop.xlane.xlu0 %330
      %v332 = vsub.f32 %v328, %v331
      %v333 = vmul.f32 %v332, 1.442695
      %v334 = vpow.pop %v333
      %v335 = vsel %vm161, %v334, 0.0
      %336 = vadd.xlane.f32.xlu0 %v335
      %v337 = vpop.xlane.xlu0 %336
      %v338 = vrcp.pop %v337
      %v339 = vmul.f32 %v334, %v338
      %v340 = vpack.c.bf16 %v339, %v339
      %341 = vrot.lane.b32.xlu0 %v158, 56
      %v342 = vpop.permute.xlu0 %341
      %v344 = vsel %vm161, %v340, 0
      %v347 = vsel %vm233, %v342, 0
      %349 = vmatprep.subr.bf16.mxu0 0
      %350 = vmatpush1.bf16.msra.mxu0 %v347
      %351 = vmatprep.subr.bf16.mxu0 0
      %352 = vmatpush1.bf16.msra.mxu0 0
      %353 = vmatprep.subr.bf16.mxu0 0
      %354 = vmatpush1.bf16.msra.mxu0 0
      %355 = vmatprep.subr.bf16.mxu0 0
      %356 = vmatpush1.bf16.msra.mxu0 0
      %357 = vmatprep.subr.bf16.mxu0 0
      %358 = vmatpush1.bf16.msra.mxu0 0
      %359 = vmatprep.subr.bf16.mxu0 0
      %360 = vmatpush1.bf16.msra.mxu0 0
      %361 = vmatprep.subr.bf16.mxu0 0
      %362 = vmatpush1.bf16.msra.mxu0 0
      %363 = vmatprep.subr.bf16.mxu0 0
      %364 = vmatpush1.bf16.msra.mxu0 0
      %365 = vmatprep.subr.bf16.mxu0 0
      %366 = vmatpush1.bf16.msra.mxu0 0
      %367 = vmatprep.subr.bf16.mxu0 0
      %368 = vmatpush1.bf16.msra.mxu0 0
      %369 = vmatprep.subr.bf16.mxu0 0
      %370 = vmatpush1.bf16.msra.mxu0 0
      %371 = vmatprep.subr.bf16.mxu0 0
      %372 = vmatpush1.bf16.msra.mxu0 0
      %373 = vmatprep.subr.bf16.mxu0 0
      %374 = vmatpush1.bf16.msra.mxu0 0
      %375 = vmatprep.subr.bf16.mxu0 0
      %376 = vmatpush1.bf16.msra.mxu0 0
      %377 = vmatprep.subr.bf16.mxu0 0
      %378 = vmatpush1.bf16.msra.mxu0 0
      %379 = vmatprep.subr.bf16.mxu0 0
      %380 = vmatpush1.bf16.msra.mxu0 0
      %381 = vmatprep.mubr.bf16.mxu0 0
      %382 = vmatmul.mubr.bf16.gmra.mrb[0].mxu0 %v344
      %v383 = vpop.f32.mrb[0].mxu0
      %v384 = vadd.f32 0.0, %v383
      %v385 = vpop.f32.mrb[0].mxu0
      %v386 = vpop.f32.mrb[0].mxu0
      %v387 = vpop.f32.mrb[0].mxu0
      %388 = vdwg.mxu0
      %389 = vrot.lane.b32.xlu0 %v158, 112
      %v390 = vpop.permute.xlu0 %389
      %391 = vrot.lane.b32.xlu0 %v158, 80
      %v392 = vpop.permute.xlu0 %391
      %v394 = vsel %vm161, %v390, 0
      %v397 = vsel %vm161, %v392, 0
      %399 = vmatprep.subr.bf16.mxu0 0
      %400 = vmatpush1.bf16.xpose.msra.mxu0 %v397
      %401 = vmatprep.subr.bf16.mxu0 0
      %402 = vmatpush1.bf16.xpose.msra.mxu0 0
      %403 = vmatprep.subr.bf16.mxu0 0
      %404 = vmatpush1.bf16.xpose.msra.mxu0 0
      %405 = vmatprep.subr.bf16.mxu0 0
      %406 = vmatpush1.bf16.xpose.msra.mxu0 0
      %407 = vmatprep.subr.bf16.mxu0 0
      %408 = vmatpush1.bf16.xpose.msra.mxu0 0
      %409 = vmatprep.subr.bf16.mxu0 0
      %410 = vmatpush1.bf16.xpose.msra.mxu0 0
      %411 = vmatprep.subr.bf16.mxu0 0
      %412 = vmatpush1.bf16.xpose.msra.mxu0 0
      %413 = vmatprep.subr.bf16.mxu0 0
      %414 = vmatpush1.bf16.xpose.msra.mxu0 0
      %415 = vmatprep.subr.bf16.mxu0 0
      %416 = vmatpush1.bf16.xpose.msra.mxu0 0
      %417 = vmatprep.subr.bf16.mxu0 0
      %418 = vmatpush1.bf16.xpose.msra.mxu0 0
      %419 = vmatprep.subr.bf16.mxu0 0
      %420 = vmatpush1.bf16.xpose.msra.mxu0 0
      %421 = vmatprep.subr.bf16.mxu0 0
      %422 = vmatpush1.bf16.xpose.msra.mxu0 0
      %423 = vmatprep.subr.bf16.mxu0 0
      %424 = vmatpush1.bf16.xpose.msra.mxu0 0
      %425 = vmatprep.subr.bf16.mxu0 0
      %426 = vmatpush1.bf16.xpose.msra.mxu0 0
      %427 = vmatprep.subr.bf16.mxu0 0
      %428 = vmatpush1.bf16.xpose.msra.mxu0 0
      %429 = vmatprep.subr.bf16.mxu0 0
      %430 = vmatpush1.bf16.xpose.msra.mxu0 0
      %431 = vmatprep.mubr.bf16.mxu0 0
      %432 = vmatmul.mubr.bf16.gmra.mrb[0].mxu0 %v394
      %v433 = vpop.f32.mrb[0].mxu0
      %v434 = vadd.f32 0.0, %v433
      %v435 = vpop.f32.mrb[0].mxu0
      %v436 = vpop.f32.mrb[0].mxu0
      %v437 = vpop.f32.mrb[0].mxu0
      %438 = vdwg.mxu0
      %v439 = vmul.f32 %v434, 0.35355338
      %v440 = vadd.f32 %v439, %v213
      %v441 = vsel %vm161, %v440, -inf
      %442 = vmax.xlane.f32.xlu0 %v441
      %v443 = vpop.xlane.xlu0 %442
      %v444 = vsub.f32 %v440, %v443
      %v445 = vmul.f32 %v444, 1.442695
      %v446 = vpow.pop %v445
      %v447 = vsel %vm161, %v446, 0.0
      %448 = vadd.xlane.f32.xlu0 %v447
      %v449 = vpop.xlane.xlu0 %448
      %v450 = vrcp.pop %v449
      %v451 = vmul.f32 %v446, %v450
      %v452 = vpack.c.bf16 %v451, %v451
      %453 = vrot.lane.b32.xlu0 %v158, 48
      %v454 = vpop.permute.xlu0 %453
      %v456 = vsel %vm161, %v452, 0
      %v459 = vsel %vm233, %v454, 0
      %461 = vmatprep.subr.bf16.mxu0 0
      %462 = vmatpush1.bf16.msra.mxu0 %v459
      %463 = vmatprep.subr.bf16.mxu0 0
      %464 = vmatpush1.bf16.msra.mxu0 0
      %465 = vmatprep.subr.bf16.mxu0 0
      %466 = vmatpush1.bf16.msra.mxu0 0
      %467 = vmatprep.subr.bf16.mxu0 0
      %468 = vmatpush1.bf16.msra.mxu0 0
      %469 = vmatprep.subr.bf16.mxu0 0
      %470 = vmatpush1.bf16.msra.mxu0 0
      %471 = vmatprep.subr.bf16.mxu0 0
      %472 = vmatpush1.bf16.msra.mxu0 0
      %473 = vmatprep.subr.bf16.mxu0 0
      %474 = vmatpush1.bf16.msra.mxu0 0
      %475 = vmatprep.subr.bf16.mxu0 0
      %476 = vmatpush1.bf16.msra.mxu0 0
      %477 = vmatprep.subr.bf16.mxu0 0
      %478 = vmatpush1.bf16.msra.mxu0 0
      %479 = vmatprep.subr.bf16.mxu0 0
      %480 = vmatpush1.bf16.msra.mxu0 0
      %481 = vmatprep.subr.bf16.mxu0 0
      %482 = vmatpush1.bf16.msra.mxu0 0
      %483 = vmatprep.subr.bf16.mxu0 0
      %484 = vmatpush1.bf16.msra.mxu0 0
      %485 = vmatprep.subr.bf16.mxu0 0
      %486 = vmatpush1.bf16.msra.mxu0 0
      %487 = vmatprep.subr.bf16.mxu0 0
      %488 = vmatpush1.bf16.msra.mxu0 0
      %489 = vmatprep.subr.bf16.mxu0 0
      %490 = vmatpush1.bf16.msra.mxu0 0
      %491 = vmatprep.subr.bf16.mxu0 0
      %492 = vmatpush1.bf16.msra.mxu0 0
      %493 = vmatprep.mubr.bf16.mxu0 0
      %494 = vmatmul.mubr.bf16.gmra.mrb[0].mxu0 %v456
      %v495 = vpop.f32.mrb[0].mxu0
      %v496 = vadd.f32 0.0, %v495
      %v497 = vpop.f32.mrb[0].mxu0
      %v498 = vpop.f32.mrb[0].mxu0
      %v499 = vpop.f32.mrb[0].mxu0
      %500 = vdwg.mxu0
      %501 = vrot.lane.b32.xlu0 %v158, 104
      %v502 = vpop.permute.xlu0 %501
      %503 = vrot.lane.b32.xlu0 %v158, 72
      %v504 = vpop.permute.xlu0 %503
      %v506 = vsel %vm161, %v502, 0
      %v509 = vsel %vm161, %v504, 0
      %511 = vmatprep.subr.bf16.mxu0 0
      %512 = vmatpush1.bf16.xpose.msra.mxu0 %v509
      %513 = vmatprep.subr.bf16.mxu0 0
      %514 = vmatpush1.bf16.xpose.msra.mxu0 0
      %515 = vmatprep.subr.bf16.mxu0 0
      %516 = vmatpush1.bf16.xpose.msra.mxu0 0
      %517 = vmatprep.subr.bf16.mxu0 0
      %518 = vmatpush1.bf16.xpose.msra.mxu0 0
      %519 = vmatprep.subr.bf16.mxu0 0
      %520 = vmatpush1.bf16.xpose.msra.mxu0 0
      %521 = vmatprep.subr.bf16.mxu0 0
      %522 = vmatpush1.bf16.xpose.msra.mxu0 0
      %523 = vmatprep.subr.bf16.mxu0 0
      %524 = vmatpush1.bf16.xpose.msra.mxu0 0
      %525 = vmatprep.subr.bf16.mxu0 0
      %526 = vmatpush1.bf16.xpose.msra.mxu0 0
      %527 = vmatprep.subr.bf16.mxu0 0
      %528 = vmatpush1.bf16.xpose.msra.mxu0 0
      %529 = vmatprep.subr.bf16.mxu0 0
      %530 = vmatpush1.bf16.xpose.msra.mxu0 0
      %531 = vmatprep.subr.bf16.mxu0 0
      %532 = vmatpush1.bf16.xpose.msra.mxu0 0
      %533 = vmatprep.subr.bf16.mxu0 0
      %534 = vmatpush1.bf16.xpose.msra.mxu0 0
      %535 = vmatprep.subr.bf16.mxu0 0
      %536 = vmatpush1.bf16.xpose.msra.mxu0 0
      %537 = vmatprep.subr.bf16.mxu0 0
      %538 = vmatpush1.bf16.xpose.msra.mxu0 0
      %539 = vmatprep.subr.bf16.mxu0 0
      %540 = vmatpush1.bf16.xpose.msra.mxu0 0
      %541 = vmatprep.subr.bf16.mxu0 0
      %542 = vmatpush1.bf16.xpose.msra.mxu0 0
      %543 = vmatprep.mubr.bf16.mxu0 0
      %544 = vmatmul.mubr.bf16.gmra.mrb[0].mxu0 %v506
      %v545 = vpop.f32.mrb[0].mxu0
      %v546 = vadd.f32 0.0, %v545
      %v547 = vpop.f32.mrb[0].mxu0
      %v548 = vpop.f32.mrb[0].mxu0
      %v549 = vpop.f32.mrb[0].mxu0
      %550 = vdwg.mxu0
      %v551 = vmul.f32 %v546, 0.35355338
      %v552 = vadd.f32 %v551, %v213
      %v553 = vsel %vm161, %v552, -inf
      %554 = vmax.xlane.f32.xlu0 %v553
      %v555 = vpop.xlane.xlu0 %554
      %v556 = vsub.f32 %v552, %v555
      %v557 = vmul.f32 %v556, 1.442695
      %v558 = vpow.pop %v557
      %v559 = vsel %vm161, %v558, 0.0
      %560 = vadd.xlane.f32.xlu0 %v559
      %v561 = vpop.xlane.xlu0 %560
      %v562 = vrcp.pop %v561
      %v563 = vmul.f32 %v558, %v562
      %v564 = vpack.c.bf16 %v563, %v563
      %565 = vrot.lane.b32.xlu0 %v158, 40
      %v566 = vpop.permute.xlu0 %565
      %v568 = vsel %vm161, %v564, 0
      %v571 = vsel %vm233, %v566, 0
      %573 = vmatprep.subr.bf16.mxu0 0
      %574 = vmatpush1.bf16.msra.mxu0 %v571
      %575 = vmatprep.subr.bf16.mxu0 0
      %576 = vmatpush1.bf16.msra.mxu0 0
      %577 = vmatprep.subr.bf16.mxu0 0
      %578 = vmatpush1.bf16.msra.mxu0 0
      %579 = vmatprep.subr.bf16.mxu0 0
      %580 = vmatpush1.bf16.msra.mxu0 0
      %581 = vmatprep.subr.bf16.mxu0 0
      %582 = vmatpush1.bf16.msra.mxu0 0
      %583 = vmatprep.subr.bf16.mxu0 0
      %584 = vmatpush1.bf16.msra.mxu0 0
      %585 = vmatprep.subr.bf16.mxu0 0
      %586 = vmatpush1.bf16.msra.mxu0 0
      %587 = vmatprep.subr.bf16.mxu0 0
      %588 = vmatpush1.bf16.msra.mxu0 0
      %589 = vmatprep.subr.bf16.mxu0 0
      %590 = vmatpush1.bf16.msra.mxu0 0
      %591 = vmatprep.subr.bf16.mxu0 0
      %592 = vmatpush1.bf16.msra.mxu0 0
      %593 = vmatprep.subr.bf16.mxu0 0
      %594 = vmatpush1.bf16.msra.mxu0 0
      %595 = vmatprep.subr.bf16.mxu0 0
      %596 = vmatpush1.bf16.msra.mxu0 0
      %597 = vmatprep.subr.bf16.mxu0 0
      %598 = vmatpush1.bf16.msra.mxu0 0
      %599 = vmatprep.subr.bf16.mxu0 0
      %600 = vmatpush1.bf16.msra.mxu0 0
      %601 = vmatprep.subr.bf16.mxu0 0
      %602 = vmatpush1.bf16.msra.mxu0 0
      %603 = vmatprep.subr.bf16.mxu0 0
      %604 = vmatpush1.bf16.msra.mxu0 0
      %605 = vmatprep.mubr.bf16.mxu0 0
      %606 = vmatmul.mubr.bf16.gmra.mrb[0].mxu0 %v568
      %v607 = vpop.f32.mrb[0].mxu0
      %v608 = vadd.f32 0.0, %v607
      %v609 = vpop.f32.mrb[0].mxu0
      %v610 = vpop.f32.mrb[0].mxu0
      %v611 = vpop.f32.mrb[0].mxu0
      %612 = vdwg.mxu0
      %614 = vrot.lane.b32.xlu0 %v384, 8
      %v615 = vpop.permute.xlu0 %614
      %618 = vrot.lane.b32.xlu0 %v496, 16
      %v619 = vpop.permute.xlu0 %618
      %622 = vrot.lane.b32.xlu0 %v608, 24
      %v623 = vpop.permute.xlu0 %622
      %v625 = vsel %vm161, %v272, %v615
      %vm626 = vcmask 130048
      %v627 = vsel %vm626, %v625, %v619
      %vm628 = vcmask 195584
      %v629 = vsel %vm628, %v627, %v623
      %v630 = vpack.c.bf16 %v629, %v629
      %vm631 = vcmask 257024
      %632 = vst.msk [vmem:[%s152] sm:$0xf] %vm631, %v630
      %p633 = scmp.lt.s32.totalorder %s13, 1
      %s634 = scalar_select %p633, %s13, 1
      %s635 = smul.addr %s634, 4
      %s636 = scalar_lea.vmem %s2, %s635
      // Predicated region
      $region29: #{_lambda_.15} parent=27 // pred_check
        %p637 = pneg %p83
      $region30: #{_lambda_.15} parent=27 // pred_check_branch
        %639 = sbr.rel (%p637) target = $region32
      $region31: #{_lambda_.15} parent=27 // pred_region
        _
      $region32: #{_lambda_.15} parent=27 // pred_fallthru
        _
    $region28: #{_lambda_.15} parent=5 // pred_fallthru
      _
    %p640 = scmp.le.s32.totalorder 2, %s8
    // Predicated region
    $region33: #{_lambda_.15} parent=5 // pred_check
      %p641 = pneg %p640
    $region34: #{_lambda_.15} parent=5 // pred_check_branch
      %643 = sbr.rel (%p641) target = $region36
    $region35: #{_lambda_.15} parent=5 // pred_region
      %s644 = ssub.s32 %s8, 2
      // Predicated region
      $region37: #{_lambda_.15} parent=35 // pred_check
        %p645 = pneg %p89
      $region38: #{_lambda_.15} parent=35 // pred_check_branch
        %647 = sbr.rel (%p645) target = $region40
      $region39: #{_lambda_.15} parent=35 // pred_region
        %p648 = scmp.lt.s32.totalorder %s14, 1
        %s649 = scalar_select %p648, %s14, 1
        %s650 = smul.addr %s649, 4
        %s651 = scalar_lea.vmem %s2, %s650
      $region40: #{_lambda_.15} parent=35 // pred_fallthru
        _
    $region36: #{_lambda_.15} parent=5 // pred_fallthru
      _
  $region6: #{_lambda_.15} parent=0 // loop_footer
    %s12 = sadd.s32 1, %s8
  $region7: #{_lambda_.15} parent=0 // loop_footer_branch
    %7 = sbr.rel target = $region3
  $region8: #{_lambda_.15} parent=0 // loop_exit
    _

// kernel: _lambda_.17
$region0: #{_lambda_.17}
  #allocation0 [shape = 'u32[]', space=smem, size = 0x4, offset = 0x4, fixed_abs, tag = 'smem constant byte address 0x4 - core index']
  #allocation1 [shape = 'u32[144,128]{1,0:T(1,128)}', space=vmem, size = 0x12000, scoped, tag = 'internal scratch']
  %s0 = inlined_call_operand.vmem [shape: bf16[16,32], index: 0, kind: input, shape index: {}]
  %s1 = inlined_call_operand.vmem [shape: bf16[32,64], index: 1, kind: input, shape index: {}]
  %s2 = inlined_call_operand.vmem [shape: f32[1,64], index: 2, kind: input, shape index: {}]
  %s3 = inlined_call_operand.vmem [shape: bf16[16,64], index: 3, kind: output, shape index: {}]
  %s4 = sld [smem:[#allocation0]]
  $region22: #{_lambda_.17} parent=0
    _
  %s6 = ssub.s32 1, %s4
  %s7 = scalar_select 0, %s6, %s4
  // Predicated region
  $region2: #{_lambda_.17} parent=0 // pred_check
    _
  $region3: #{_lambda_.17} parent=0 // pred_check_branch
    %9 = sbr.rel (0) target = $region5
  $region4: #{_lambda_.17} parent=0 // pred_region
    _
  $region5: #{_lambda_.17} parent=0 // pred_fallthru
    _
  // Predicated region
  $region6: #{_lambda_.17} parent=0 // pred_check
    _
  $region7: #{_lambda_.17} parent=0 // pred_check_branch
    %11 = sbr.rel (0) target = $region9
  $region8: #{_lambda_.17} parent=0 // pred_region
    _
  $region9: #{_lambda_.17} parent=0 // pred_fallthru
    _
  // Predicated region
  $region10: #{_lambda_.17} parent=0 // pred_check
    _
  $region11: #{_lambda_.17} parent=0 // pred_check_branch
    %13 = sbr.rel (0) target = $region13
  $region12: #{_lambda_.17} parent=0 // pred_region
    _
  $region13: #{_lambda_.17} parent=0 // pred_fallthru
    _
  %v15 = vld [vmem:[%s0] sm:$0xf]
  %v16 = vld [vmem:[%s0 + $0x4] sm:$0xf]
  %v17 = vld [vmem:[%s1] sm:$0xf]
  %v18 = vld [vmem:[%s1 + $0x4] sm:$0xf]
  %v19 = vld [vmem:[%s1 + $0x8] sm:$0xf]
  %v20 = vld [vmem:[%s1 + $0xc] sm:$0xf]
  %v21 = vld [vmem:[%s2] sm:$0x1]
  %v23 = vlaneseq
  %v24 = vshrl.u32 %v23, 7
  %v25 = vsub.s32 0, %v24
  %v26 = vrot.slane %v21, %v25
  %v30 = vunpack.c.l.b16 %v15
  %v31 = vunpack.c.l.b16 %v16
  %v32 = vpack.c.b16 %v31, %v30
  %v37 = vunpack.c.l.b16 %v17
  %v38 = vunpack.c.l.b16 %v18
  %v39 = vunpack.c.l.b16 %v19
  %v40 = vunpack.c.l.b16 %v20
  %v41 = vpack.c.b16 %v38, %v37
  %v42 = vpack.c.b16 %v40, %v39
  %vm45 = vcmask 261120
  %v47 = vsel %vm45, %v32, 0
  %49 = vmatprep.subr.bf16.mxu0 0
  %50 = vmatpush1.bf16.msra.mxu0 %v41
  %51 = vmatprep.subr.bf16.mxu0 0
  %52 = vmatpush1.bf16.msra.mxu0 %v42
  %53 = vmatprep.subr.bf16.mxu0 0
  %54 = vmatpush1.bf16.msra.mxu0 0
  %55 = vmatprep.subr.bf16.mxu0 0
  %56 = vmatpush1.bf16.msra.mxu0 0
  %57 = vmatprep.subr.bf16.mxu0 0
  %58 = vmatpush1.bf16.msra.mxu0 0
  %59 = vmatprep.subr.bf16.mxu0 0
  %60 = vmatpush1.bf16.msra.mxu0 0
  %61 = vmatprep.subr.bf16.mxu0 0
  %62 = vmatpush1.bf16.msra.mxu0 0
  %63 = vmatprep.subr.bf16.mxu0 0
  %64 = vmatpush1.bf16.msra.mxu0 0
  %65 = vmatprep.subr.bf16.mxu0 0
  %66 = vmatpush1.bf16.msra.mxu0 0
  %67 = vmatprep.subr.bf16.mxu0 0
  %68 = vmatpush1.bf16.msra.mxu0 0
  %69 = vmatprep.subr.bf16.mxu0 0
  %70 = vmatpush1.bf16.msra.mxu0 0
  %71 = vmatprep.subr.bf16.mxu0 0
  %72 = vmatpush1.bf16.msra.mxu0 0
  %73 = vmatprep.subr.bf16.mxu0 0
  %74 = vmatpush1.bf16.msra.mxu0 0
  %75 = vmatprep.subr.bf16.mxu0 0
  %76 = vmatpush1.bf16.msra.mxu0 0
  %77 = vmatprep.subr.bf16.mxu0 0
  %78 = vmatpush1.bf16.msra.mxu0 0
  %79 = vmatprep.subr.bf16.mxu0 0
  %80 = vmatpush1.bf16.msra.mxu0 0
  %81 = vmatprep.mubr.bf16.mxu0 0
  %82 = vmatmul.mubr.bf16.gmra.mrb[0].mxu0 %v47
  %v83 = vpop.f32.mrb[0].mxu0
  %v84 = vadd.f32 %v26, %v83
  %v85 = vpop.f32.mrb[0].mxu0
  %v86 = vpop.f32.mrb[0].mxu0
  %v87 = vadd.f32 %v26, %v86
  %v88 = vpop.f32.mrb[0].mxu0
  %89 = vdwg.mxu0
  %v90 = vmul.f32 %v84, 0.5
  %v91 = vmul.f32 %v87, 0.5
  %v92 = vmul.f32 %v84, 0.044715
  %v93 = vmul.f32 %v87, 0.044715
  %v94 = vmul.f32 %v92, %v84
  %v95 = vmul.f32 %v93, %v87
  %v96 = vmul.f32 %v94, %v84
  %v97 = vmul.f32 %v95, %v87
  %v98 = vadd.f32 %v84, %v96
  %v99 = vadd.f32 %v87, %v97
  %v100 = vmul.f32 %v98, 0.7978846
  %v101 = vmul.f32 %v99, 0.7978846
  %v102 = vtanh.pop %v100
  %v103 = vtanh.pop %v101
  %v104 = vadd.f32 %v102, 1.0
  %v105 = vadd.f32 %v103, 1.0
  %v106 = vmul.f32 %v90, %v104
  %v107 = vmul.f32 %v91, %v105
  %v108 = vpack.c.bf16 %v107, %v106
  %v110 = vunpack.c.l.b16 %v108
  %v111 = vunpack.c.h.b16 %v108
  %v112 = vpack.c.b16 %v110, %v110
  %v113 = vpack.c.b16 %v111, %v111
  %vm116 = vcmask 519168
  %117 = vst.msk [vmem:[%s3] sm:$0xf] %vm116, %v112
  %118 = vst.msk [vmem:[%s3 + $0x4] sm:$0xf] %vm116, %v113
  // Predicated region
  $region14: #{_lambda_.17} parent=0 // pred_check
    _
  $region15: #{_lambda_.17} parent=0 // pred_check_branch
    %120 = sbr.rel (0) target = $region17
  $region16: #{_lambda_.17} parent=0 // pred_region
    _
  $region17: #{_lambda_.17} parent=0 // pred_fallthru
    _
  // Predicated region
  $region18: #{_lambda_.17} parent=0 // pred_check
    _
  $region19: #{_lambda_.17} parent=0 // pred_check_branch
    %122 = sbr.rel (0) target = $region21
  $region20: #{_lambda_.17} parent=0 // pred_region
    _
  $region21: #{_lambda_.17} parent=0 // pred_fallthru
    _

// kernel: _lambda_.25
$region0: #{_lambda_.25}
  #allocation0 [shape = 'u32[]', space=smem, size = 0x4, offset = 0x4, fixed_abs, tag = 'smem constant byte address 0x4 - core index']
  #allocation1 [shape = 'u32[144,128]{1,0:T(1,128)}', space=vmem, size = 0x12000, scoped, tag = 'internal scratch']
  %s0 = inlined_call_operand.vmem [shape: bf16[16,32], index: 0, kind: input, shape index: {}]
  %s1 = inlined_call_operand.vmem [shape: bf16[32,128], index: 1, kind: input, shape index: {}]
  %s2 = inlined_call_operand.vmem [shape: f32[1,128], index: 2, kind: input, shape index: {}]
  %s3 = inlined_call_operand.hbm [shape: bf16[16,128], index: 3, kind: output, shape index: {}]
  %s4 = sld [smem:[#allocation0]]
  $region22: #{_lambda_.25} parent=0
    _
  %s6 = ssub.s32 1, %s4
  %s7 = scalar_select 0, %s6, %s4
  $region1: #{_lambda_.25} parent=0
    #allocation2 [shape = 'u8[4096]{0}', space=vmem, size = 0x1000, scoped, tag = 'output window, operand 0, single buffered']
    #allocation3 [shape = 's32[1]{0}', space=sflag, size = 0x4, scoped, tag = 'scoped memory for _lambda_.25']
    %8 = vsyncpa [#allocation3], 0
    // Predicated region
    $region2: #{_lambda_.25} parent=1 // pred_check
      _
    $region3: #{_lambda_.25} parent=1 // pred_check_branch
      %10 = sbr.rel (0) target = $region5
    $region4: #{_lambda_.25} parent=1 // pred_region
      _
    $region5: #{_lambda_.25} parent=1 // pred_fallthru
      _
    // Predicated region
    $region6: #{_lambda_.25} parent=1 // pred_check
      _
    $region7: #{_lambda_.25} parent=1 // pred_check_branch
      %12 = sbr.rel (0) target = $region9
    $region8: #{_lambda_.25} parent=1 // pred_region
      _
    $region9: #{_lambda_.25} parent=1 // pred_fallthru
      _
    // Predicated region
    $region10: #{_lambda_.25} parent=1 // pred_check
      _
    $region11: #{_lambda_.25} parent=1 // pred_check_branch
      %14 = sbr.rel (0) target = $region13
    $region12: #{_lambda_.25} parent=1 // pred_region
      _
    $region13: #{_lambda_.25} parent=1 // pred_fallthru
      _
    %v16 = vld [vmem:[%s0] sm:$0xf]
    %v17 = vld [vmem:[%s0 + $0x4] sm:$0xf]
    %v18 = vld [vmem:[%s1] sm:$0xf]
    %v19 = vld [vmem:[%s1 + $0x4] sm:$0xf]
    %v20 = vld [vmem:[%s1 + $0x8] sm:$0xf]
    %v21 = vld [vmem:[%s1 + $0xc] sm:$0xf]
    %v22 = vld [vmem:[%s2] sm:$0x1]
    %v24 = vlaneseq
    %v25 = vshrl.u32 %v24, 7
    %v26 = vsub.s32 0, %v25
    %v27 = vrot.slane %v22, %v26
    %v31 = vunpack.c.l.b16 %v16
    %v32 = vunpack.c.l.b16 %v17
    %v33 = vpack.c.b16 %v32, %v31
    %v38 = vunpack.c.l.b16 %v18
    %v39 = vunpack.c.l.b16 %v19
    %v40 = vunpack.c.l.b16 %v20
    %v41 = vunpack.c.l.b16 %v21
    %v42 = vpack.c.b16 %v39, %v38
    %v43 = vpack.c.b16 %v41, %v40
    %vm46 = vcmask 261120
    %v48 = vsel %vm46, %v33, 0
    %50 = vmatprep.subr.bf16.mxu0 0
    %51 = vmatpush1.bf16.msra.mxu0 %v42
    %52 = vmatprep.subr.bf16.mxu0 0
    %53 = vmatpush1.bf16.msra.mxu0 %v43
    %54 = vmatprep.subr.bf16.mxu0 0
    %55 = vmatpush1.bf16.msra.mxu0 0
    %56 = vmatprep.subr.bf16.mxu0 0
    %57 = vmatpush1.bf16.msra.mxu0 0
    %58 = vmatprep.subr.bf16.mxu0 0
    %59 = vmatpush1.bf16.msra.mxu0 0
    %60 = vmatprep.subr.bf16.mxu0 0
    %61 = vmatpush1.bf16.msra.mxu0 0
    %62 = vmatprep.subr.bf16.mxu0 0
    %63 = vmatpush1.bf16.msra.mxu0 0
    %64 = vmatprep.subr.bf16.mxu0 0
    %65 = vmatpush1.bf16.msra.mxu0 0
    %66 = vmatprep.subr.bf16.mxu0 0
    %67 = vmatpush1.bf16.msra.mxu0 0
    %68 = vmatprep.subr.bf16.mxu0 0
    %69 = vmatpush1.bf16.msra.mxu0 0
    %70 = vmatprep.subr.bf16.mxu0 0
    %71 = vmatpush1.bf16.msra.mxu0 0
    %72 = vmatprep.subr.bf16.mxu0 0
    %73 = vmatpush1.bf16.msra.mxu0 0
    %74 = vmatprep.subr.bf16.mxu0 0
    %75 = vmatpush1.bf16.msra.mxu0 0
    %76 = vmatprep.subr.bf16.mxu0 0
    %77 = vmatpush1.bf16.msra.mxu0 0
    %78 = vmatprep.subr.bf16.mxu0 0
    %79 = vmatpush1.bf16.msra.mxu0 0
    %80 = vmatprep.subr.bf16.mxu0 0
    %81 = vmatpush1.bf16.msra.mxu0 0
    %82 = vmatprep.mubr.bf16.mxu0 0
    %83 = vmatmul.mubr.bf16.gmra.mrb[0].mxu0 %v48
    %v84 = vpop.f32.mrb[0].mxu0
    %v85 = vadd.f32 %v27, %v84
    %v86 = vpop.f32.mrb[0].mxu0
    %v87 = vpop.f32.mrb[0].mxu0
    %v88 = vadd.f32 %v27, %v87
    %v89 = vpop.f32.mrb[0].mxu0
    %90 = vdwg.mxu0
    %v91 = vpack.c.bf16 %v88, %v85
    %v93 = vunpack.c.l.b16 %v91
    %v94 = vunpack.c.h.b16 %v91
    %v95 = vpack.c.b16 %v93, %v93
    %v96 = vpack.c.b16 %v94, %v94
    %99 = vst [vmem:[#allocation2] sm:$0xf] %v95
    %100 = vst [vmem:[#allocation2 + $0x4] sm:$0xf] %v96
    // Predicated region
    $region14: #{_lambda_.25} parent=1 // pred_check
      _
    $region15: #{_lambda_.25} parent=1 // pred_check_branch
      %102 = sbr.rel (0) target = $region17
    $region16: #{_lambda_.25} parent=1 // pred_region
      %s104 = ssub.s32 128, 128
      %105 = vsyncadd [#allocation3], %s104
      %s106 = sshll.u32 [#allocation2], 4
      %s107 = int_to_ptr.vmem [resolvable:$true] %s106
      %112 = dma.vmem_to_hbm [thread:$0]  %s107, 128, %s3, [#allocation3], 64, 64, 4
    $region17: #{_lambda_.25} parent=1 // pred_fallthru
      _
    // Predicated region
    $region18: #{_lambda_.25} parent=1 // pred_check
      _
    $region19: #{_lambda_.25} parent=1 // pred_check_branch
      %114 = sbr.rel (0) target = $region21
    $region20: #{_lambda_.25} parent=1 // pred_region
      %115 = dma.done [#allocation3], 128
    $region21: #{_lambda_.25} parent=1 // pred_fallthru
      _
    %116 = vsyncpa [#allocation3], 1

// kernel: _lambda_.18
$region0: #{_lambda_.18}
  #allocation0 [shape = 'u32[]', space=smem, size = 0x4, offset = 0x4, fixed_abs, tag = 'smem constant byte address 0x4 - core index']
  #allocation1 [shape = 'u32[144,128]{1,0:T(1,128)}', space=vmem, size = 0x12000, scoped, tag = 'internal scratch']
  %s0 = inlined_call_operand.vmem [shape: bf16[16,64], index: 0, kind: input, shape index: {}]
  %s1 = inlined_call_operand.vmem [shape: bf16[64,32], index: 1, kind: input, shape index: {}]
  %s2 = inlined_call_operand.vmem [shape: f32[1,32], index: 2, kind: input, shape index: {}]
  %s3 = inlined_call_operand.vmem [shape: bf16[16,32], index: 3, kind: input, shape index: {}]
  %s4 = inlined_call_operand.vmem [shape: f32[1,32], index: 4, kind: input, shape index: {}]
  %s5 = inlined_call_operand.vmem [shape: f32[1,32], index: 5, kind: input, shape index: {}]
  %s6 = inlined_call_operand.vmem [shape: bf16[16,32], index: 6, kind: output, shape index: {}]
  %s7 = sld [smem:[#allocation0]]
  $region34: #{_lambda_.18} parent=0
    _
  %s9 = ssub.s32 1, %s7
  %s10 = scalar_select 0, %s9, %s7
  // Predicated region
  $region2: #{_lambda_.18} parent=0 // pred_check
    _
  $region3: #{_lambda_.18} parent=0 // pred_check_branch
    %12 = sbr.rel (0) target = $region5
  $region4: #{_lambda_.18} parent=0 // pred_region
    _
  $region5: #{_lambda_.18} parent=0 // pred_fallthru
    _
  // Predicated region
  $region6: #{_lambda_.18} parent=0 // pred_check
    _
  $region7: #{_lambda_.18} parent=0 // pred_check_branch
    %14 = sbr.rel (0) target = $region9
  $region8: #{_lambda_.18} parent=0 // pred_region
    _
  $region9: #{_lambda_.18} parent=0 // pred_fallthru
    _
  // Predicated region
  $region10: #{_lambda_.18} parent=0 // pred_check
    _
  $region11: #{_lambda_.18} parent=0 // pred_check_branch
    %16 = sbr.rel (0) target = $region13
  $region12: #{_lambda_.18} parent=0 // pred_region
    _
  $region13: #{_lambda_.18} parent=0 // pred_fallthru
    _
  // Predicated region
  $region14: #{_lambda_.18} parent=0 // pred_check
    _
  $region15: #{_lambda_.18} parent=0 // pred_check_branch
    %18 = sbr.rel (0) target = $region17
  $region16: #{_lambda_.18} parent=0 // pred_region
    _
  $region17: #{_lambda_.18} parent=0 // pred_fallthru
    _
  // Predicated region
  $region18: #{_lambda_.18} parent=0 // pred_check
    _
  $region19: #{_lambda_.18} parent=0 // pred_check_branch
    %20 = sbr.rel (0) target = $region21
  $region20: #{_lambda_.18} parent=0 // pred_region
    _
  $region21: #{_lambda_.18} parent=0 // pred_fallthru
    _
  // Predicated region
  $region22: #{_lambda_.18} parent=0 // pred_check
    _
  $region23: #{_lambda_.18} parent=0 // pred_check_branch
    %22 = sbr.rel (0) target = $region25
  $region24: #{_lambda_.18} parent=0 // pred_region
    _
  $region25: #{_lambda_.18} parent=0 // pred_fallthru
    _
  %v24 = vld [vmem:[%s0] sm:$0xf]
  %v25 = vld [vmem:[%s0 + $0x4] sm:$0xf]
  %v26 = vld [vmem:[%s1] sm:$0xf]
  %v27 = vld [vmem:[%s1 + $0x4] sm:$0xf]
  %v28 = vld [vmem:[%s1 + $0x8] sm:$0xf]
  %v29 = vld [vmem:[%s1 + $0xc] sm:$0xf]
  %v30 = vld [vmem:[%s1 + $0x10] sm:$0xf]
  %v31 = vld [vmem:[%s1 + $0x14] sm:$0xf]
  %v32 = vld [vmem:[%s1 + $0x18] sm:$0xf]
  %v33 = vld [vmem:[%s1 + $0x1c] sm:$0xf]
  %v34 = vld [vmem:[%s2] sm:$0x1]
  %v36 = vlaneseq
  %v37 = vshrl.u32 %v36, 7
  %v38 = vsub.s32 0, %v37
  %v39 = vrot.slane %v34, %v38
  %v43 = vunpack.c.l.b16 %v24
  %v44 = vunpack.c.l.b16 %v25
  %v45 = vpack.c.b16 %v44, %v43
  %v54 = vunpack.c.l.b16 %v26
  %v55 = vunpack.c.l.b16 %v27
  %v56 = vunpack.c.l.b16 %v28
  %v57 = vunpack.c.l.b16 %v29
  %v58 = vunpack.c.l.b16 %v30
  %v59 = vunpack.c.l.b16 %v31
  %v60 = vunpack.c.l.b16 %v32
  %v61 = vunpack.c.l.b16 %v33
  %v62 = vpack.c.b16 %v55, %v54
  %v63 = vpack.c.b16 %v57, %v56
  %v64 = vpack.c.b16 %v59, %v58
  %v65 = vpack.c.b16 %v61, %v60
  %vm70 = vcmask 523264
  %v72 = vsel %vm70, %v45, 0
  %74 = vmatprep.subr.bf16.mxu0 0
  %75 = vmatpush1.bf16.msra.mxu0 %v62
  %76 = vmatprep.subr.bf16.mxu0 0
  %77 = vmatpush1.bf16.msra.mxu0 %v63
  %78 = vmatprep.subr.bf16.mxu0 0
  %79 = vmatpush1.bf16.msra.mxu0 %v64
  %80 = vmatprep.subr.bf16.mxu0 0
  %81 = vmatpush1.bf16.msra.mxu0 %v65
  %82 = vmatprep.subr.bf16.mxu0 0
  %83 = vmatpush1.bf16.msra.mxu0 0
  %84 = vmatprep.subr.bf16.mxu0 0
  %85 = vmatpush1.bf16.msra.mxu0 0
  %86 = vmatprep.subr.bf16.mxu0 0
  %87 = vmatpush1.bf16.msra.mxu0 0
  %88 = vmatprep.subr.bf16.mxu0 0
  %89 = vmatpush1.bf16.msra.mxu0 0
  %90 = vmatprep.subr.bf16.mxu0 0
  %91 = vmatpush1.bf16.msra.mxu0 0
  %92 = vmatprep.subr.bf16.mxu0 0
  %93 = vmatpush1.bf16.msra.mxu0 0
  %94 = vmatprep.subr.bf16.mxu0 0
  %95 = vmatpush1.bf16.msra.mxu0 0
  %96 = vmatprep.subr.bf16.mxu0 0
  %97 = vmatpush1.bf16.msra.mxu0 0
  %98 = vmatprep.subr.bf16.mxu0 0
  %99 = vmatpush1.bf16.msra.mxu0 0
  %100 = vmatprep.subr.bf16.mxu0 0
  %101 = vmatpush1.bf16.msra.mxu0 0
  %102 = vmatprep.subr.bf16.mxu0 0
  %103 = vmatpush1.bf16.msra.mxu0 0
  %104 = vmatprep.subr.bf16.mxu0 0
  %105 = vmatpush1.bf16.msra.mxu0 0
  %106 = vmatprep.mubr.bf16.mxu0 0
  %107 = vmatmul.mubr.bf16.gmra.mrb[0].mxu0 %v72
  %v108 = vpop.f32.mrb[0].mxu0
  %v109 = vadd.f32 %v39, %v108
  %v110 = vpop.f32.mrb[0].mxu0
  %v111 = vpop.f32.mrb[0].mxu0
  %v112 = vadd.f32 %v39, %v111
  %v113 = vpop.f32.mrb[0].mxu0
  %114 = vdwg.mxu0
  %v115 = vld [vmem:[%s3] sm:$0xf]
  %v116 = vld [vmem:[%s3 + $0x4] sm:$0xf]
  %v117 = vunpack.c.l.bf16 %v115
  %v118 = vunpack.c.l.bf16 %v116
  %v119 = vadd.f32 %v109, %v117
  %v120 = vadd.f32 %v112, %v118
  %vm121 = vcmask 261120
  %v122 = vsel %vm121, %v119, 0.0
  %123 = vadd.xlane.f32.xlu0 %v122
  %v124 = vpop.xlane.xlu0 %123
  %v125 = vsel %vm121, %v120, 0.0
  %126 = vadd.xlane.f32.xlu0 %v125
  %v127 = vpop.xlane.xlu0 %126
  %v128 = vrcp.pop 32.0
  %v129 = vmul.f32 %v124, %v128
  %v130 = vmul.f32 %v127, %v128
  %v131 = vsub.f32 %v119, %v129
  %v132 = vsub.f32 %v120, %v130
  %v133 = vmul.f32 %v131, %v131
  %v134 = vmul.f32 %v132, %v132
  %v135 = vsel %vm121, %v133, 0.0
  %136 = vadd.xlane.f32.xlu0 %v135
  %v137 = vpop.xlane.xlu0 %136
  %v138 = vsel %vm121, %v134, 0.0
  %139 = vadd.xlane.f32.xlu0 %v138
  %v140 = vpop.xlane.xlu0 %139
  %v141 = vmul.f32 %v137, %v128
  %v142 = vmul.f32 %v140, %v128
  %v143 = vadd.f32 %v141, 1e-12
  %v144 = vadd.f32 %v142, 1e-12
  %v145 = vrsqrt.pop %v143
  %v146 = vrsqrt.pop %v144
  %v147 = vmul.f32 %v131, %v145
  %v148 = vmul.f32 %v132, %v146
  %v149 = vld [vmem:[%s4] sm:$0x1]
  %v151 = vlaneseq
  %v152 = vshrl.u32 %v151, 7
  %v153 = vsub.s32 0, %v152
  %v154 = vrot.slane %v149, %v153
  %v156 = vmul.f32 %v147, %v154
  %v157 = vmul.f32 %v148, %v154
  %v158 = vld [vmem:[%s5] sm:$0x1]
  %v160 = vlaneseq
  %v161 = vshrl.u32 %v160, 7
  %v162 = vsub.s32 0, %v161
  %v163 = vrot.slane %v158, %v162
  %v165 = vadd.f32 %v156, %v163
  %v166 = vadd.f32 %v157, %v163
  %v167 = vpack.c.bf16 %v166, %v165
  %v169 = vunpack.c.l.b16 %v167
  %v170 = vunpack.c.h.b16 %v167
  %v171 = vpack.c.b16 %v169, %v169
  %v172 = vpack.c.b16 %v170, %v170
  %vm175 = vcmask 257024
  %176 = vst.msk [vmem:[%s6] sm:$0xf] %vm175, %v171
  %177 = vst.msk [vmem:[%s6 + $0x4] sm:$0xf] %vm175, %v172
  // Predicated region
  $region26: #{_lambda_.18} parent=0 // pred_check
    _
  $region27: #{_lambda_.18} parent=0 // pred_check_branch
    %179 = sbr.rel (0) target = $region29
  $region28: #{_lambda_.18} parent=0 // pred_region
    _
  $region29: #{_lambda_.18} parent=0 // pred_fallthru
    _
  // Predicated region
  $region30: #{_lambda_.18} parent=0 // pred_check
    _
  $region31: #{_lambda_.18} parent=0 // pred_check_branch
    %181 = sbr.rel (0) target = $region33
  $region32: #{_lambda_.18} parent=0 // pred_region
    _
  $region33: #{_lambda_.18} parent=0 // pred_fallthru
    _

// kernel: _lambda_.24
$region0: #{_lambda_.24}
  #allocation0 [shape = 'u32[]', space=smem, size = 0x4, offset = 0x4, fixed_abs, tag = 'smem constant byte address 0x4 - core index']
  #allocation1 [shape = 'u32[144,128]{1,0:T(1,128)}', space=vmem, size = 0x12000, scoped, tag = 'internal scratch']
  %s0 = inlined_call_operand.vmem [shape: bf16[16,32], index: 0, kind: input, shape index: {}]
  %s1 = inlined_call_operand.vmem [shape: bf16[32,32], index: 1, kind: input, shape index: {}]
  %s2 = inlined_call_operand.vmem [shape: f32[1,32], index: 2, kind: input, shape index: {}]
  %s3 = inlined_call_operand.vmem [shape: f32[1,32], index: 3, kind: input, shape index: {}]
  %s4 = inlined_call_operand.vmem [shape: f32[1,32], index: 4, kind: input, shape index: {}]
  %s5 = inlined_call_operand.vmem [shape: bf16[16,32], index: 5, kind: output, shape index: {}]
  %s6 = sld [smem:[#allocation0]]
  $region30: #{_lambda_.24} parent=0
    _
  %s8 = ssub.s32 1, %s6
  %s9 = scalar_select 0, %s8, %s6
  // Predicated region
  $region2: #{_lambda_.24} parent=0 // pred_check
    _
  $region3: #{_lambda_.24} parent=0 // pred_check_branch
    %11 = sbr.rel (0) target = $region5
  $region4: #{_lambda_.24} parent=0 // pred_region
    _
  $region5: #{_lambda_.24} parent=0 // pred_fallthru
    _
  // Predicated region
  $region6: #{_lambda_.24} parent=0 // pred_check
    _
  $region7: #{_lambda_.24} parent=0 // pred_check_branch
    %13 = sbr.rel (0) target = $region9
  $region8: #{_lambda_.24} parent=0 // pred_region
    _
  $region9: #{_lambda_.24} parent=0 // pred_fallthru
    _
  // Predicated region
  $region10: #{_lambda_.24} parent=0 // pred_check
    _
  $region11: #{_lambda_.24} parent=0 // pred_check_branch
    %15 = sbr.rel (0) target = $region13
  $region12: #{_lambda_.24} parent=0 // pred_region
    _
  $region13: #{_lambda_.24} parent=0 // pred_fallthru
    _
  // Predicated region
  $region14: #{_lambda_.24} parent=0 // pred_check
    _
  $region15: #{_lambda_.24} parent=0 // pred_check_branch
    %17 = sbr.rel (0) target = $region17
  $region16: #{_lambda_.24} parent=0 // pred_region
    _
  $region17: #{_lambda_.24} parent=0 // pred_fallthru
    _
  // Predicated region
  $region18: #{_lambda_.24} parent=0 // pred_check
    _
  $region19: #{_lambda_.24} parent=0 // pred_check_branch
    %19 = sbr.rel (0) target = $region21
  $region20: #{_lambda_.24} parent=0 // pred_region
    _
  $region21: #{_lambda_.24} parent=0 // pred_fallthru
    _
  %v21 = vld [vmem:[%s0] sm:$0xf]
  %v22 = vld [vmem:[%s0 + $0x4] sm:$0xf]
  %v23 = vld [vmem:[%s1] sm:$0xf]
  %v24 = vld [vmem:[%s1 + $0x4] sm:$0xf]
  %v25 = vld [vmem:[%s1 + $0x8] sm:$0xf]
  %v26 = vld [vmem:[%s1 + $0xc] sm:$0xf]
  %v27 = vld [vmem:[%s2] sm:$0x1]
  %v29 = vlaneseq
  %v30 = vshrl.u32 %v29, 7
  %v31 = vsub.s32 0, %v30
  %v32 = vrot.slane %v27, %v31
  %v36 = vunpack.c.l.b16 %v21
  %v37 = vunpack.c.l.b16 %v22
  %v38 = vpack.c.b16 %v37, %v36
  %v43 = vunpack.c.l.b16 %v23
  %v44 = vunpack.c.l.b16 %v24
  %v45 = vunpack.c.l.b16 %v25
  %v46 = vunpack.c.l.b16 %v26
  %v47 = vpack.c.b16 %v44, %v43
  %v48 = vpack.c.b16 %v46, %v45
  %vm51 = vcmask 261120
  %v53 = vsel %vm51, %v38, 0
  %55 = vmatprep.subr.bf16.mxu0 0
  %56 = vmatpush1.bf16.msra.mxu0 %v47
  %57 = vmatprep.subr.bf16.mxu0 0
  %58 = vmatpush1.bf16.msra.mxu0 %v48
  %59 = vmatprep.subr.bf16.mxu0 0
  %60 = vmatpush1.bf16.msra.mxu0 0
  %61 = vmatprep.subr.bf16.mxu0 0
  %62 = vmatpush1.bf16.msra.mxu0 0
  %63 = vmatprep.subr.bf16.mxu0 0
  %64 = vmatpush1.bf16.msra.mxu0 0
  %65 = vmatprep.subr.bf16.mxu0 0
  %66 = vmatpush1.bf16.msra.mxu0 0
  %67 = vmatprep.subr.bf16.mxu0 0
  %68 = vmatpush1.bf16.msra.mxu0 0
  %69 = vmatprep.subr.bf16.mxu0 0
  %70 = vmatpush1.bf16.msra.mxu0 0
  %71 = vmatprep.subr.bf16.mxu0 0
  %72 = vmatpush1.bf16.msra.mxu0 0
  %73 = vmatprep.subr.bf16.mxu0 0
  %74 = vmatpush1.bf16.msra.mxu0 0
  %75 = vmatprep.subr.bf16.mxu0 0
  %76 = vmatpush1.bf16.msra.mxu0 0
  %77 = vmatprep.subr.bf16.mxu0 0
  %78 = vmatpush1.bf16.msra.mxu0 0
  %79 = vmatprep.subr.bf16.mxu0 0
  %80 = vmatpush1.bf16.msra.mxu0 0
  %81 = vmatprep.subr.bf16.mxu0 0
  %82 = vmatpush1.bf16.msra.mxu0 0
  %83 = vmatprep.subr.bf16.mxu0 0
  %84 = vmatpush1.bf16.msra.mxu0 0
  %85 = vmatprep.subr.bf16.mxu0 0
  %86 = vmatpush1.bf16.msra.mxu0 0
  %87 = vmatprep.mubr.bf16.mxu0 0
  %88 = vmatmul.mubr.bf16.gmra.mrb[0].mxu0 %v53
  %v89 = vpop.f32.mrb[0].mxu0
  %v90 = vadd.f32 %v32, %v89
  %v91 = vpop.f32.mrb[0].mxu0
  %v92 = vpop.f32.mrb[0].mxu0
  %v93 = vadd.f32 %v32, %v92
  %v94 = vpop.f32.mrb[0].mxu0
  %95 = vdwg.mxu0
  %v96 = vmul.f32 %v90, 0.5
  %v97 = vmul.f32 %v93, 0.5
  %v98 = vmul.f32 %v90, 0.044715
  %v99 = vmul.f32 %v93, 0.044715
  %v100 = vmul.f32 %v98, %v90
  %v101 = vmul.f32 %v99, %v93
  %v102 = vmul.f32 %v100, %v90
  %v103 = vmul.f32 %v101, %v93
  %v104 = vadd.f32 %v90, %v102
  %v105 = vadd.f32 %v93, %v103
  %v106 = vmul.f32 %v104, 0.7978846
  %v107 = vmul.f32 %v105, 0.7978846
  %v108 = vtanh.pop %v106
  %v109 = vtanh.pop %v107
  %v110 = vadd.f32 %v108, 1.0
  %v111 = vadd.f32 %v109, 1.0
  %v112 = vmul.f32 %v96, %v110
  %v113 = vmul.f32 %v97, %v111
  %v114 = vsel %vm51, %v112, 0.0
  %115 = vadd.xlane.f32.xlu0 %v114
  %v116 = vpop.xlane.xlu0 %115
  %v117 = vsel %vm51, %v113, 0.0
  %118 = vadd.xlane.f32.xlu0 %v117
  %v119 = vpop.xlane.xlu0 %118
  %v120 = vrcp.pop 32.0
  %v121 = vmul.f32 %v116, %v120
  %v122 = vmul.f32 %v119, %v120
  %v123 = vsub.f32 %v112, %v121
  %v124 = vsub.f32 %v113, %v122
  %v125 = vmul.f32 %v123, %v123
  %v126 = vmul.f32 %v124, %v124
  %v127 = vsel %vm51, %v125, 0.0
  %128 = vadd.xlane.f32.xlu0 %v127
  %v129 = vpop.xlane.xlu0 %128
  %v130 = vsel %vm51, %v126, 0.0
  %131 = vadd.xlane.f32.xlu0 %v130
  %v132 = vpop.xlane.xlu0 %131
  %v133 = vmul.f32 %v129, %v120
  %v134 = vmul.f32 %v132, %v120
  %v135 = vadd.f32 %v133, 1e-12
  %v136 = vadd.f32 %v134, 1e-12
  %v137 = vrsqrt.pop %v135
  %v138 = vrsqrt.pop %v136
  %v139 = vmul.f32 %v123, %v137
  %v140 = vmul.f32 %v124, %v138
  %v141 = vld [vmem:[%s3] sm:$0x1]
  %v143 = vlaneseq
  %v144 = vshrl.u32 %v143, 7
  %v145 = vsub.s32 0, %v144
  %v146 = vrot.slane %v141, %v145
  %v148 = vmul.f32 %v139, %v146
  %v149 = vmul.f32 %v140, %v146
  %v150 = vld [vmem:[%s4] sm:$0x1]
  %v152 = vlaneseq
  %v153 = vshrl.u32 %v152, 7
  %v154 = vsub.s32 0, %v153
  %v155 = vrot.slane %v150, %v154
  %v157 = vadd.f32 %v148, %v155
  %v158 = vadd.f32 %v149, %v155
  %v159 = vpack.c.bf16 %v158, %v157
  %v161 = vunpack.c.l.b16 %v159
  %v162 = vunpack.c.h.b16 %v159
  %v163 = vpack.c.b16 %v161, %v161
  %v164 = vpack.c.b16 %v162, %v162
  %vm167 = vcmask 257024
  %168 = vst.msk [vmem:[%s5] sm:$0xf] %vm167, %v163
  %169 = vst.msk [vmem:[%s5 + $0x4] sm:$0xf] %vm167, %v164
  // Predicated region
  $region22: #{_lambda_.24} parent=0 // pred_check
    _
  $region23: #{_lambda_.24} parent=0 // pred_check_branch
    %171 = sbr.rel (0) target = $region25
  $region24: #{_lambda_.24} parent=0 // pred_region
    _
  $region25: #{_lambda_.24} parent=0 // pred_fallthru
    _
  // Predicated region
  $region26: #{_lambda_.24} parent=0 // pred_check
    _
  $region27: #{_lambda_.24} parent=0 // pred_check_branch
    %173 = sbr.rel (0) target = $region29
  $region28: #{_lambda_.24} parent=0 // pred_region
    _
  $region29: #{_lambda_.24} parent=0 // pred_fallthru
    _

</llo_original>
